<compile_context>
chip_gen: v7x
topology: tpu7x:2x2x1
jax: 0.10.0
libtpu: 0.0.40
codegen_flags: <defaults>
</compile_context>

<pallas_src>
import jax
import jax.numpy as jnp
from jax import lax
from jax.experimental import pallas as pl
from jax.experimental.pallas import tpu as pltpu

# ---- problem sizes (match the PyTorch module) --------------------------------
TEXT = 'We are learning to build a language model with LSTM networks in NLP'
WORDS = TEXT.split()
VOCAB = sorted(set(WORDS))
VOCAB_SIZE = len(VOCAB)          # 13
EMBEDDING_DIM = 10
HIDDEN_DIM = 20

BP = 8      # batch rows padded to one sublane tile
HP = 128    # each gate's column block padded to one lane tile


# ---- Pallas kernel: one-hot input projection + LSTM recurrence + Linear ------
def lstm_fc_kernel(idx_ref, proj_ref, whh_ref, wfc_ref, bfc_ref, out_ref, xp_ref):
    # idx_ref  : (T*BP, 1) int32  token ids, time-major, batch padded to BP
    # proj_ref : (V, 4*HP) f32    emb @ W_ih.T + bias, gate k in lanes [k*HP, k*HP+H)
    # whh_ref  : (HP, 4*HP) f32   hidden->gate weights, same lane packing, rows >= H zero
    # wfc_ref  : (HP, V)  f32     final linear weight (rows >= H zero)
    # bfc_ref  : (1, V)   f32     final linear bias
    # out_ref  : (B, V)   f32     logits at the last timestep
    # xp_ref   : (T*BP, 4*HP) f32 scratch: per-timestep input projections
    TB = idx_ref.shape[0]
    T = TB // BP
    V = proj_ref.shape[0]
    B = out_ref.shape[0]

    # ---- fused embedding lookup + input projection: ONE MXU matmul ----------
    lane = lax.broadcasted_iota(jnp.int32, (TB, V), 1)
    one_hot = (lane == idx_ref[...]).astype(jnp.float32)            # (TB, V)
    xp_ref[...] = jnp.dot(one_hot, proj_ref[...],
                          preferred_element_type=jnp.float32)       # (TB, 4*HP)

    # h/c kept at HP=128 lanes (lanes >= H stay exactly zero: padded weight
    # columns/rows are zero, so padded pre-activations are 0 -> sigmoid=0.5,
    # tanh=0 -> c_pad, h_pad remain 0).
    h = jnp.zeros((BP, HP), jnp.float32)
    c = jnp.zeros((BP, HP), jnp.float32)

    # ---- fully unrolled recurrence (T is static) -----------------------------
    for t in range(T):
        # sublane-aligned slice (start = t*8) + one (BP,HP)@(HP,4*HP) matmul
        pre = xp_ref[pl.ds(t * BP, BP), :] + jnp.dot(
            h, whh_ref[...], preferred_element_type=jnp.float32)    # (BP, 4*HP)
        # whole-vreg, 128-aligned gate slices; per-gate activations
        i_g = jax.nn.sigmoid(pre[:, 0 * HP:1 * HP])
        f_g = jax.nn.sigmoid(pre[:, 1 * HP:2 * HP])
        g_g = jnp.tanh(pre[:, 2 * HP:3 * HP])
        o_g = jax.nn.sigmoid(pre[:, 3 * HP:4 * HP])
        c = f_g * c + i_g * g_g
        h = o_g * jnp.tanh(c)

    # ---- final Linear on the last hidden state -------------------------------
    logits = jnp.dot(h, wfc_ref[...],
                     preferred_element_type=jnp.float32) + bfc_ref[...]  # (BP, V)
    out_ref[...] = logits[:B, :]


def lstm_model_forward(x_idx, params):
    """x_idx: (B, T) int token indices -> logits (B, VOCAB_SIZE)."""
    emb = params["embedding"].astype(jnp.float32)                 # (V, E)
    w_ih = params["w_ih"].astype(jnp.float32)                     # (4H, E) PyTorch layout
    w_hh = params["w_hh"].astype(jnp.float32)                     # (4H, H)
    b_all = (params["b_ih"] + params["b_hh"]).astype(jnp.float32)  # (4H,)
    w_fc = params["w_fc"].astype(jnp.float32)                     # (V, H)
    b_fc = params["b_fc"].astype(jnp.float32)                     # (V,)

    B, T = x_idx.shape
    H, V = HIDDEN_DIM, VOCAB_SIZE

    # Fold embedding + input projection + bias into one (V, 4H) table, then
    # lane-pad each gate block (PyTorch order i,f,g,o) to HP=128 columns.
    proj_small = emb @ w_ih.T + b_all                             # (V, 4H)
    whh_small = w_hh.T                                            # (H, 4H)
    proj_table = jnp.zeros((V, 4 * HP), jnp.float32)
    whh_pad = jnp.zeros((HP, 4 * HP), jnp.float32)
    for k in range(4):
        proj_table = proj_table.at[:, k * HP:k * HP + H].set(
            proj_small[:, k * H:(k + 1) * H])
        whh_pad = whh_pad.at[:H, k * HP:k * HP + H].set(
            whh_small[:, k * H:(k + 1) * H])
    wfc_pad = jnp.zeros((HP, V), jnp.float32).at[:H, :].set(w_fc.T)
    bfc_r = b_fc.reshape(1, V)

    # Token ids: time-major, batch padded to BP rows (padded rows use id 0 and
    # are discarded; batch rows never mix, so they cannot affect valid rows).
    idx_tm = (jnp.zeros((T, BP), jnp.int32)
              .at[:, :B].set(x_idx.astype(jnp.int32).T)
              .reshape(T * BP, 1))

    vmem = pl.BlockSpec(memory_space=pltpu.MemorySpace.VMEM)
    out = pl.pallas_call(
        lstm_fc_kernel,
        out_shape=jax.ShapeDtypeStruct((B, V), jnp.float32),
        in_specs=[vmem] * 5,
        out_specs=vmem,
        scratch_shapes=[pltpu.VMEM((T * BP, 4 * HP), jnp.float32)],
    )(idx_tm, proj_table, whh_pad, wfc_pad, bfc_r)
    return out


# ---- pure-JAX reference for a sanity check -----------------------------------
def lstm_model_reference(x_idx, params):
    emb = params["embedding"][x_idx].astype(jnp.float32)          # (B, T, E)
    B, T, _ = emb.shape
    H = HIDDEN_DIM
    w_ih, w_hh = params["w_ih"], params["w_hh"]
    b = params["b_ih"] + params["b_hh"]

    def step(carry, x_t):
        h, c = carry
        gates = x_t @ w_ih.T + h @ w_hh.T + b                     # (B, 4H)
        i = jax.nn.sigmoid(gates[:, 0:H])
        f = jax.nn.sigmoid(gates[:, H:2 * H])
        g = jnp.tanh(gates[:, 2 * H:3 * H])
        o = jax.nn.sigmoid(gates[:, 3 * H:4 * H])
        c = f * c + i * g
        h = o * jnp.tanh(c)
        return (h, c), None

    h0 = jnp.zeros((B, H), jnp.float32)
    c0 = jnp.zeros((B, H), jnp.float32)
    (h_T, _), _ = lax.scan(step, (h0, c0), jnp.transpose(emb, (1, 0, 2)))
    return h_T @ params["w_fc"].T + params["b_fc"]


def init_params(key):
    ks = jax.random.split(key, 7)
    H, E, V = HIDDEN_DIM, EMBEDDING_DIM, VOCAB_SIZE
    s = 1.0 / jnp.sqrt(H)
    return {
        "embedding": jax.random.normal(ks[0], (V, E), jnp.float32),
        "w_ih": jax.random.uniform(ks[1], (4 * H, E), jnp.float32, -s, s),
        "w_hh": jax.random.uniform(ks[2], (4 * H, H), jnp.float32, -s, s),
        "b_ih": jax.random.uniform(ks[3], (4 * H,), jnp.float32, -s, s),
        "b_hh": jax.random.uniform(ks[4], (4 * H,), jnp.float32, -s, s),
        "w_fc": jax.random.uniform(ks[5], (V, H), jnp.float32, -s, s),
        "b_fc": jax.random.uniform(ks[6], (V,), jnp.float32, -s, s),
    }


if __name__ == "__main__":
    key = jax.random.PRNGKey(0)
    pkey, xkey = jax.random.split(key)
    params = init_params(pkey)

    B, T = 2, 8
    x_idx = jax.random.randint(xkey, (B, T), 0, VOCAB_SIZE, dtype=jnp.int32)

    logits = jax.jit(lstm_model_forward)(x_idx, params)
    logits = jax.block_until_ready(logits)

    ref = lstm_model_reference(x_idx, params)
    assert logits.shape == (B, VOCAB_SIZE)
    assert jnp.allclose(logits, ref, rtol=1e-4, atol=1e-4), "mismatch vs reference"

    print("KERNEL_OK")
</pallas_src>

<mosaic_0001>
module attributes {stable_mosaic.version = 11 : i64} {
  func.func @lstm_fc_kernel(%arg0: memref<64x1xi32, #tpu.memory_space<vmem>>, %arg1: memref<13x512xf32, #tpu.memory_space<vmem>>, %arg2: memref<128x512xf32, #tpu.memory_space<vmem>>, %arg3: memref<128x13xf32, #tpu.memory_space<vmem>>, %arg4: memref<1x13xf32, #tpu.memory_space<vmem>>, %arg5: memref<2x13xf32, #tpu.memory_space<vmem>>, %arg6: memref<64x512xf32, #tpu.memory_space<vmem>>) attributes {dimension_semantics = [], scalar_prefetch = 0 : i64, scratch_operands = 1 : i64, tpu.core_type = #tpu.core_type<tc>} {
    %0 = tpu.iota {dimensions = array<i32: 1>} : vector<64x13xi32>
    %c0 = arith.constant 0 : index
    %c0_0 = arith.constant 0 : index
    %1 = vector.load %arg0[%c0, %c0_0] : memref<64x1xi32, #tpu.memory_space<vmem>>, vector<64x1xi32>
    %2 = vector.broadcast %1 : vector<64x1xi32> to vector<64x13xi32>
    %3 = arith.cmpi eq, %0, %2 : vector<64x13xi32>
    %4 = arith.extui %3 : vector<64x13xi1> to vector<64x13xi32>
    %5 = arith.sitofp %4 : vector<64x13xi32> to vector<64x13xf32>
    %c0_1 = arith.constant 0 : index
    %c0_2 = arith.constant 0 : index
    %6 = vector.load %arg1[%c0_1, %c0_2] : memref<13x512xf32, #tpu.memory_space<vmem>>, vector<13x512xf32>
    %cst = arith.constant dense<0.000000e+00> : vector<64x512xf32>
    %7 = tpu.matmul %5, %6, %cst {dimension_numbers = #tpu.dot_dimension_numbers<[1], [0], [0], [1], [0, 0, 1, 1], [], []>} : vector<64x13xf32>, vector<13x512xf32>, vector<64x512xf32> -> vector<64x512xf32>
    %c0_3 = arith.constant 0 : index
    %c0_4 = arith.constant 0 : index
    %8 = vector.load %arg6[%c0_3, %c0_4] : memref<64x512xf32, #tpu.memory_space<vmem>>, vector<64x512xf32>
    tpu.vector_store %arg6[%c0_3, %c0_4], %7 {strides = array<i32>} : memref<64x512xf32, #tpu.memory_space<vmem>>, vector<64x512xf32>,
    %cst_5 = arith.constant 0.000000e+00 : f32
    %9 = vector.broadcast %cst_5 : f32 to vector<8x128xf32>
    %cst_6 = arith.constant 0.000000e+00 : f32
    %10 = vector.broadcast %cst_6 : f32 to vector<8x128xf32>
    %c0_7 = arith.constant 0 : index
    %c0_8 = arith.constant 0 : index
    %11 = vector.load %arg6[%c0_7, %c0_8] : memref<64x512xf32, #tpu.memory_space<vmem>>, vector<8x512xf32>
    %c0_9 = arith.constant 0 : index
    %c0_10 = arith.constant 0 : index
    %12 = vector.load %arg2[%c0_9, %c0_10] : memref<128x512xf32, #tpu.memory_space<vmem>>, vector<128x512xf32>
    %cst_11 = arith.constant dense<0.000000e+00> : vector<8x512xf32>
    %13 = tpu.matmul %9, %12, %cst_11 {dimension_numbers = #tpu.dot_dimension_numbers<[1], [0], [0], [1], [0, 0, 1, 1], [], []>} : vector<8x128xf32>, vector<128x512xf32>, vector<8x512xf32> -> vector<8x512xf32>
    %14 = arith.addf %11, %13 : vector<8x512xf32>
    %15 = vector.extract_strided_slice %14 {offsets = [0, 0], sizes = [8, 128], strides = [1, 1]} : vector<8x512xf32> to vector<8x128xf32>
    %16 = arith.negf %15 : vector<8x128xf32>
    %17 = math.exp %16 : vector<8x128xf32>
    %cst_12 = arith.constant 1.000000e+00 : f32
    %18 = vector.broadcast %cst_12 : f32 to vector<8x128xf32>
    %19 = arith.addf %18, %17 : vector<8x128xf32>
    %20 = arith.divf %18, %19 : vector<8x128xf32>
    %21 = vector.extract_strided_slice %14 {offsets = [0, 128], sizes = [8, 128], strides = [1, 1]} : vector<8x512xf32> to vector<8x128xf32>
    %22 = arith.negf %21 : vector<8x128xf32>
    %23 = math.exp %22 : vector<8x128xf32>
    %cst_13 = arith.constant 1.000000e+00 : f32
    %24 = vector.broadcast %cst_13 : f32 to vector<8x128xf32>
    %25 = arith.addf %24, %23 : vector<8x128xf32>
    %26 = arith.divf %24, %25 : vector<8x128xf32>
    %27 = vector.extract_strided_slice %14 {offsets = [0, 256], sizes = [8, 128], strides = [1, 1]} : vector<8x512xf32> to vector<8x128xf32>
    %28 = math.tanh %27 : vector<8x128xf32>
    %29 = vector.extract_strided_slice %14 {offsets = [0, 384], sizes = [8, 128], strides = [1, 1]} : vector<8x512xf32> to vector<8x128xf32>
    %30 = arith.negf %29 : vector<8x128xf32>
    %31 = math.exp %30 : vector<8x128xf32>
    %cst_14 = arith.constant 1.000000e+00 : f32
    %32 = vector.broadcast %cst_14 : f32 to vector<8x128xf32>
    %33 = arith.addf %32, %31 : vector<8x128xf32>
    %34 = arith.divf %32, %33 : vector<8x128xf32>
    %35 = arith.mulf %26, %10 : vector<8x128xf32>
    %36 = arith.mulf %20, %28 : vector<8x128xf32>
    %37 = arith.addf %35, %36 : vector<8x128xf32>
    %38 = math.tanh %37 : vector<8x128xf32>
    %39 = arith.mulf %34, %38 : vector<8x128xf32>
    %c8 = arith.constant 8 : index
    %c0_15 = arith.constant 0 : index
    %40 = vector.load %arg6[%c8, %c0_15] : memref<64x512xf32, #tpu.memory_space<vmem>>, vector<8x512xf32>
    %c0_16 = arith.constant 0 : index
    %c0_17 = arith.constant 0 : index
    %41 = vector.load %arg2[%c0_16, %c0_17] : memref<128x512xf32, #tpu.memory_space<vmem>>, vector<128x512xf32>
    %cst_18 = arith.constant dense<0.000000e+00> : vector<8x512xf32>
    %42 = tpu.matmul %39, %41, %cst_18 {dimension_numbers = #tpu.dot_dimension_numbers<[1], [0], [0], [1], [0, 0, 1, 1], [], []>} : vector<8x128xf32>, vector<128x512xf32>, vector<8x512xf32> -> vector<8x512xf32>
    %43 = arith.addf %40, %42 : vector<8x512xf32>
    %44 = vector.extract_strided_slice %43 {offsets = [0, 0], sizes = [8, 128], strides = [1, 1]} : vector<8x512xf32> to vector<8x128xf32>
    %45 = arith.negf %44 : vector<8x128xf32>
    %46 = math.exp %45 : vector<8x128xf32>
    %cst_19 = arith.constant 1.000000e+00 : f32
    %47 = vector.broadcast %cst_19 : f32 to vector<8x128xf32>
    %48 = arith.addf %47, %46 : vector<8x128xf32>
    %49 = arith.divf %47, %48 : vector<8x128xf32>
    %50 = vector.extract_strided_slice %43 {offsets = [0, 128], sizes = [8, 128], strides = [1, 1]} : vector<8x512xf32> to vector<8x128xf32>
    %51 = arith.negf %50 : vector<8x128xf32>
    %52 = math.exp %51 : vector<8x128xf32>
    %cst_20 = arith.constant 1.000000e+00 : f32
    %53 = vector.broadcast %cst_20 : f32 to vector<8x128xf32>
    %54 = arith.addf %53, %52 : vector<8x128xf32>
    %55 = arith.divf %53, %54 : vector<8x128xf32>
    %56 = vector.extract_strided_slice %43 {offsets = [0, 256], sizes = [8, 128], strides = [1, 1]} : vector<8x512xf32> to vector<8x128xf32>
    %57 = math.tanh %56 : vector<8x128xf32>
    %58 = vector.extract_strided_slice %43 {offsets = [0, 384], sizes = [8, 128], strides = [1, 1]} : vector<8x512xf32> to vector<8x128xf32>
    %59 = arith.negf %58 : vector<8x128xf32>
    %60 = math.exp %59 : vector<8x128xf32>
    %cst_21 = arith.constant 1.000000e+00 : f32
    %61 = vector.broadcast %cst_21 : f32 to vector<8x128xf32>
    %62 = arith.addf %61, %60 : vector<8x128xf32>
    %63 = arith.divf %61, %62 : vector<8x128xf32>
    %64 = arith.mulf %55, %37 : vector<8x128xf32>
    %65 = arith.mulf %49, %57 : vector<8x128xf32>
    %66 = arith.addf %64, %65 : vector<8x128xf32>
    %67 = math.tanh %66 : vector<8x128xf32>
    %68 = arith.mulf %63, %67 : vector<8x128xf32>
    %c16 = arith.constant 16 : index
    %c0_22 = arith.constant 0 : index
    %69 = vector.load %arg6[%c16, %c0_22] : memref<64x512xf32, #tpu.memory_space<vmem>>, vector<8x512xf32>
    %c0_23 = arith.constant 0 : index
    %c0_24 = arith.constant 0 : index
    %70 = vector.load %arg2[%c0_23, %c0_24] : memref<128x512xf32, #tpu.memory_space<vmem>>, vector<128x512xf32>
    %cst_25 = arith.constant dense<0.000000e+00> : vector<8x512xf32>
    %71 = tpu.matmul %68, %70, %cst_25 {dimension_numbers = #tpu.dot_dimension_numbers<[1], [0], [0], [1], [0, 0, 1, 1], [], []>} : vector<8x128xf32>, vector<128x512xf32>, vector<8x512xf32> -> vector<8x512xf32>
    %72 = arith.addf %69, %71 : vector<8x512xf32>
    %73 = vector.extract_strided_slice %72 {offsets = [0, 0], sizes = [8, 128], strides = [1, 1]} : vector<8x512xf32> to vector<8x128xf32>
    %74 = arith.negf %73 : vector<8x128xf32>
    %75 = math.exp %74 : vector<8x128xf32>
    %cst_26 = arith.constant 1.000000e+00 : f32
    %76 = vector.broadcast %cst_26 : f32 to vector<8x128xf32>
    %77 = arith.addf %76, %75 : vector<8x128xf32>
    %78 = arith.divf %76, %77 : vector<8x128xf32>
    %79 = vector.extract_strided_slice %72 {offsets = [0, 128], sizes = [8, 128], strides = [1, 1]} : vector<8x512xf32> to vector<8x128xf32>
    %80 = arith.negf %79 : vector<8x128xf32>
    %81 = math.exp %80 : vector<8x128xf32>
    %cst_27 = arith.constant 1.000000e+00 : f32
    %82 = vector.broadcast %cst_27 : f32 to vector<8x128xf32>
    %83 = arith.addf %82, %81 : vector<8x128xf32>
    %84 = arith.divf %82, %83 : vector<8x128xf32>
    %85 = vector.extract_strided_slice %72 {offsets = [0, 256], sizes = [8, 128], strides = [1, 1]} : vector<8x512xf32> to vector<8x128xf32>
    %86 = math.tanh %85 : vector<8x128xf32>
    %87 = vector.extract_strided_slice %72 {offsets = [0, 384], sizes = [8, 128], strides = [1, 1]} : vector<8x512xf32> to vector<8x128xf32>
    %88 = arith.negf %87 : vector<8x128xf32>
    %89 = math.exp %88 : vector<8x128xf32>
    %cst_28 = arith.constant 1.000000e+00 : f32
    %90 = vector.broadcast %cst_28 : f32 to vector<8x128xf32>
    %91 = arith.addf %90, %89 : vector<8x128xf32>
    %92 = arith.divf %90, %91 : vector<8x128xf32>
    %93 = arith.mulf %84, %66 : vector<8x128xf32>
    %94 = arith.mulf %78, %86 : vector<8x128xf32>
    %95 = arith.addf %93, %94 : vector<8x128xf32>
    %96 = math.tanh %95 : vector<8x128xf32>
    %97 = arith.mulf %92, %96 : vector<8x128xf32>
    %c24 = arith.constant 24 : index
    %c0_29 = arith.constant 0 : index
    %98 = vector.load %arg6[%c24, %c0_29] : memref<64x512xf32, #tpu.memory_space<vmem>>, vector<8x512xf32>
    %c0_30 = arith.constant 0 : index
    %c0_31 = arith.constant 0 : index
    %99 = vector.load %arg2[%c0_30, %c0_31] : memref<128x512xf32, #tpu.memory_space<vmem>>, vector<128x512xf32>
    %cst_32 = arith.constant dense<0.000000e+00> : vector<8x512xf32>
    %100 = tpu.matmul %97, %99, %cst_32 {dimension_numbers = #tpu.dot_dimension_numbers<[1], [0], [0], [1], [0, 0, 1, 1], [], []>} : vector<8x128xf32>, vector<128x512xf32>, vector<8x512xf32> -> vector<8x512xf32>
    %101 = arith.addf %98, %100 : vector<8x512xf32>
    %102 = vector.extract_strided_slice %101 {offsets = [0, 0], sizes = [8, 128], strides = [1, 1]} : vector<8x512xf32> to vector<8x128xf32>
    %103 = arith.negf %102 : vector<8x128xf32>
    %104 = math.exp %103 : vector<8x128xf32>
    %cst_33 = arith.constant 1.000000e+00 : f32
    %105 = vector.broadcast %cst_33 : f32 to vector<8x128xf32>
    %106 = arith.addf %105, %104 : vector<8x128xf32>
    %107 = arith.divf %105, %106 : vector<8x128xf32>
    %108 = vector.extract_strided_slice %101 {offsets = [0, 128], sizes = [8, 128], strides = [1, 1]} : vector<8x512xf32> to vector<8x128xf32>
    %109 = arith.negf %108 : vector<8x128xf32>
    %110 = math.exp %109 : vector<8x128xf32>
    %cst_34 = arith.constant 1.000000e+00 : f32
    %111 = vector.broadcast %cst_34 : f32 to vector<8x128xf32>
    %112 = arith.addf %111, %110 : vector<8x128xf32>
    %113 = arith.divf %111, %112 : vector<8x128xf32>
    %114 = vector.extract_strided_slice %101 {offsets = [0, 256], sizes = [8, 128], strides = [1, 1]} : vector<8x512xf32> to vector<8x128xf32>
    %115 = math.tanh %114 : vector<8x128xf32>
    %116 = vector.extract_strided_slice %101 {offsets = [0, 384], sizes = [8, 128], strides = [1, 1]} : vector<8x512xf32> to vector<8x128xf32>
    %117 = arith.negf %116 : vector<8x128xf32>
    %118 = math.exp %117 : vector<8x128xf32>
    %cst_35 = arith.constant 1.000000e+00 : f32
    %119 = vector.broadcast %cst_35 : f32 to vector<8x128xf32>
    %120 = arith.addf %119, %118 : vector<8x128xf32>
    %121 = arith.divf %119, %120 : vector<8x128xf32>
    %122 = arith.mulf %113, %95 : vector<8x128xf32>
    %123 = arith.mulf %107, %115 : vector<8x128xf32>
    %124 = arith.addf %122, %123 : vector<8x128xf32>
    %125 = math.tanh %124 : vector<8x128xf32>
    %126 = arith.mulf %121, %125 : vector<8x128xf32>
    %c32 = arith.constant 32 : index
    %c0_36 = arith.constant 0 : index
    %127 = vector.load %arg6[%c32, %c0_36] : memref<64x512xf32, #tpu.memory_space<vmem>>, vector<8x512xf32>
    %c0_37 = arith.constant 0 : index
    %c0_38 = arith.constant 0 : index
    %128 = vector.load %arg2[%c0_37, %c0_38] : memref<128x512xf32, #tpu.memory_space<vmem>>, vector<128x512xf32>
    %cst_39 = arith.constant dense<0.000000e+00> : vector<8x512xf32>
    %129 = tpu.matmul %126, %128, %cst_39 {dimension_numbers = #tpu.dot_dimension_numbers<[1], [0], [0], [1], [0, 0, 1, 1], [], []>} : vector<8x128xf32>, vector<128x512xf32>, vector<8x512xf32> -> vector<8x512xf32>
    %130 = arith.addf %127, %129 : vector<8x512xf32>
    %131 = vector.extract_strided_slice %130 {offsets = [0, 0], sizes = [8, 128], strides = [1, 1]} : vector<8x512xf32> to vector<8x128xf32>
    %132 = arith.negf %131 : vector<8x128xf32>
    %133 = math.exp %132 : vector<8x128xf32>
    %cst_40 = arith.constant 1.000000e+00 : f32
    %134 = vector.broadcast %cst_40 : f32 to vector<8x128xf32>
    %135 = arith.addf %134, %133 : vector<8x128xf32>
    %136 = arith.divf %134, %135 : vector<8x128xf32>
    %137 = vector.extract_strided_slice %130 {offsets = [0, 128], sizes = [8, 128], strides = [1, 1]} : vector<8x512xf32> to vector<8x128xf32>
    %138 = arith.negf %137 : vector<8x128xf32>
    %139 = math.exp %138 : vector<8x128xf32>
    %cst_41 = arith.constant 1.000000e+00 : f32
    %140 = vector.broadcast %cst_41 : f32 to vector<8x128xf32>
    %141 = arith.addf %140, %139 : vector<8x128xf32>
    %142 = arith.divf %140, %141 : vector<8x128xf32>
    %143 = vector.extract_strided_slice %130 {offsets = [0, 256], sizes = [8, 128], strides = [1, 1]} : vector<8x512xf32> to vector<8x128xf32>
    %144 = math.tanh %143 : vector<8x128xf32>
    %145 = vector.extract_strided_slice %130 {offsets = [0, 384], sizes = [8, 128], strides = [1, 1]} : vector<8x512xf32> to vector<8x128xf32>
    %146 = arith.negf %145 : vector<8x128xf32>
    %147 = math.exp %146 : vector<8x128xf32>
    %cst_42 = arith.constant 1.000000e+00 : f32
    %148 = vector.broadcast %cst_42 : f32 to vector<8x128xf32>
    %149 = arith.addf %148, %147 : vector<8x128xf32>
    %150 = arith.divf %148, %149 : vector<8x128xf32>
    %151 = arith.mulf %142, %124 : vector<8x128xf32>
    %152 = arith.mulf %136, %144 : vector<8x128xf32>
    %153 = arith.addf %151, %152 : vector<8x128xf32>
    %154 = math.tanh %153 : vector<8x128xf32>
    %155 = arith.mulf %150, %154 : vector<8x128xf32>
    %c40 = arith.constant 40 : index
    %c0_43 = arith.constant 0 : index
    %156 = vector.load %arg6[%c40, %c0_43] : memref<64x512xf32, #tpu.memory_space<vmem>>, vector<8x512xf32>
    %c0_44 = arith.constant 0 : index
    %c0_45 = arith.constant 0 : index
    %157 = vector.load %arg2[%c0_44, %c0_45] : memref<128x512xf32, #tpu.memory_space<vmem>>, vector<128x512xf32>
    %cst_46 = arith.constant dense<0.000000e+00> : vector<8x512xf32>
    %158 = tpu.matmul %155, %157, %cst_46 {dimension_numbers = #tpu.dot_dimension_numbers<[1], [0], [0], [1], [0, 0, 1, 1], [], []>} : vector<8x128xf32>, vector<128x512xf32>, vector<8x512xf32> -> vector<8x512xf32>
    %159 = arith.addf %156, %158 : vector<8x512xf32>
    %160 = vector.extract_strided_slice %159 {offsets = [0, 0], sizes = [8, 128], strides = [1, 1]} : vector<8x512xf32> to vector<8x128xf32>
    %161 = arith.negf %160 : vector<8x128xf32>
    %162 = math.exp %161 : vector<8x128xf32>
    %cst_47 = arith.constant 1.000000e+00 : f32
    %163 = vector.broadcast %cst_47 : f32 to vector<8x128xf32>
    %164 = arith.addf %163, %162 : vector<8x128xf32>
    %165 = arith.divf %163, %164 : vector<8x128xf32>
    %166 = vector.extract_strided_slice %159 {offsets = [0, 128], sizes = [8, 128], strides = [1, 1]} : vector<8x512xf32> to vector<8x128xf32>
    %167 = arith.negf %166 : vector<8x128xf32>
    %168 = math.exp %167 : vector<8x128xf32>
    %cst_48 = arith.constant 1.000000e+00 : f32
    %169 = vector.broadcast %cst_48 : f32 to vector<8x128xf32>
    %170 = arith.addf %169, %168 : vector<8x128xf32>
    %171 = arith.divf %169, %170 : vector<8x128xf32>
    %172 = vector.extract_strided_slice %159 {offsets = [0, 256], sizes = [8, 128], strides = [1, 1]} : vector<8x512xf32> to vector<8x128xf32>
    %173 = math.tanh %172 : vector<8x128xf32>
    %174 = vector.extract_strided_slice %159 {offsets = [0, 384], sizes = [8, 128], strides = [1, 1]} : vector<8x512xf32> to vector<8x128xf32>
    %175 = arith.negf %174 : vector<8x128xf32>
    %176 = math.exp %175 : vector<8x128xf32>
    %cst_49 = arith.constant 1.000000e+00 : f32
    %177 = vector.broadcast %cst_49 : f32 to vector<8x128xf32>
    %178 = arith.addf %177, %176 : vector<8x128xf32>
    %179 = arith.divf %177, %178 : vector<8x128xf32>
    %180 = arith.mulf %171, %153 : vector<8x128xf32>
    %181 = arith.mulf %165, %173 : vector<8x128xf32>
    %182 = arith.addf %180, %181 : vector<8x128xf32>
    %183 = math.tanh %182 : vector<8x128xf32>
    %184 = arith.mulf %179, %183 : vector<8x128xf32>
    %c48 = arith.constant 48 : index
    %c0_50 = arith.constant 0 : index
    %185 = vector.load %arg6[%c48, %c0_50] : memref<64x512xf32, #tpu.memory_space<vmem>>, vector<8x512xf32>
    %c0_51 = arith.constant 0 : index
    %c0_52 = arith.constant 0 : index
    %186 = vector.load %arg2[%c0_51, %c0_52] : memref<128x512xf32, #tpu.memory_space<vmem>>, vector<128x512xf32>
    %cst_53 = arith.constant dense<0.000000e+00> : vector<8x512xf32>
    %187 = tpu.matmul %184, %186, %cst_53 {dimension_numbers = #tpu.dot_dimension_numbers<[1], [0], [0], [1], [0, 0, 1, 1], [], []>} : vector<8x128xf32>, vector<128x512xf32>, vector<8x512xf32> -> vector<8x512xf32>
    %188 = arith.addf %185, %187 : vector<8x512xf32>
    %189 = vector.extract_strided_slice %188 {offsets = [0, 0], sizes = [8, 128], strides = [1, 1]} : vector<8x512xf32> to vector<8x128xf32>
    %190 = arith.negf %189 : vector<8x128xf32>
    %191 = math.exp %190 : vector<8x128xf32>
    %cst_54 = arith.constant 1.000000e+00 : f32
    %192 = vector.broadcast %cst_54 : f32 to vector<8x128xf32>
    %193 = arith.addf %192, %191 : vector<8x128xf32>
    %194 = arith.divf %192, %193 : vector<8x128xf32>
    %195 = vector.extract_strided_slice %188 {offsets = [0, 128], sizes = [8, 128], strides = [1, 1]} : vector<8x512xf32> to vector<8x128xf32>
    %196 = arith.negf %195 : vector<8x128xf32>
    %197 = math.exp %196 : vector<8x128xf32>
    %cst_55 = arith.constant 1.000000e+00 : f32
    %198 = vector.broadcast %cst_55 : f32 to vector<8x128xf32>
    %199 = arith.addf %198, %197 : vector<8x128xf32>
    %200 = arith.divf %198, %199 : vector<8x128xf32>
    %201 = vector.extract_strided_slice %188 {offsets = [0, 256], sizes = [8, 128], strides = [1, 1]} : vector<8x512xf32> to vector<8x128xf32>
    %202 = math.tanh %201 : vector<8x128xf32>
    %203 = vector.extract_strided_slice %188 {offsets = [0, 384], sizes = [8, 128], strides = [1, 1]} : vector<8x512xf32> to vector<8x128xf32>
    %204 = arith.negf %203 : vector<8x128xf32>
    %205 = math.exp %204 : vector<8x128xf32>
    %cst_56 = arith.constant 1.000000e+00 : f32
    %206 = vector.broadcast %cst_56 : f32 to vector<8x128xf32>
    %207 = arith.addf %206, %205 : vector<8x128xf32>
    %208 = arith.divf %206, %207 : vector<8x128xf32>
    %209 = arith.mulf %200, %182 : vector<8x128xf32>
    %210 = arith.mulf %194, %202 : vector<8x128xf32>
    %211 = arith.addf %209, %210 : vector<8x128xf32>
    %212 = math.tanh %211 : vector<8x128xf32>
    %213 = arith.mulf %208, %212 : vector<8x128xf32>
    %c56 = arith.constant 56 : index
    %c0_57 = arith.constant 0 : index
    %214 = vector.load %arg6[%c56, %c0_57] : memref<64x512xf32, #tpu.memory_space<vmem>>, vector<8x512xf32>
    %c0_58 = arith.constant 0 : index
    %c0_59 = arith.constant 0 : index
    %215 = vector.load %arg2[%c0_58, %c0_59] : memref<128x512xf32, #tpu.memory_space<vmem>>, vector<128x512xf32>
    %cst_60 = arith.constant dense<0.000000e+00> : vector<8x512xf32>
    %216 = tpu.matmul %213, %215, %cst_60 {dimension_numbers = #tpu.dot_dimension_numbers<[1], [0], [0], [1], [0, 0, 1, 1], [], []>} : vector<8x128xf32>, vector<128x512xf32>, vector<8x512xf32> -> vector<8x512xf32>
    %217 = arith.addf %214, %216 : vector<8x512xf32>
    %218 = vector.extract_strided_slice %217 {offsets = [0, 0], sizes = [8, 128], strides = [1, 1]} : vector<8x512xf32> to vector<8x128xf32>
    %219 = arith.negf %218 : vector<8x128xf32>
    %220 = math.exp %219 : vector<8x128xf32>
    %cst_61 = arith.constant 1.000000e+00 : f32
    %221 = vector.broadcast %cst_61 : f32 to vector<8x128xf32>
    %222 = arith.addf %221, %220 : vector<8x128xf32>
    %223 = arith.divf %221, %222 : vector<8x128xf32>
    %224 = vector.extract_strided_slice %217 {offsets = [0, 128], sizes = [8, 128], strides = [1, 1]} : vector<8x512xf32> to vector<8x128xf32>
    %225 = arith.negf %224 : vector<8x128xf32>
    %226 = math.exp %225 : vector<8x128xf32>
    %cst_62 = arith.constant 1.000000e+00 : f32
    %227 = vector.broadcast %cst_62 : f32 to vector<8x128xf32>
    %228 = arith.addf %227, %226 : vector<8x128xf32>
    %229 = arith.divf %227, %228 : vector<8x128xf32>
    %230 = vector.extract_strided_slice %217 {offsets = [0, 256], sizes = [8, 128], strides = [1, 1]} : vector<8x512xf32> to vector<8x128xf32>
    %231 = math.tanh %230 : vector<8x128xf32>
    %232 = vector.extract_strided_slice %217 {offsets = [0, 384], sizes = [8, 128], strides = [1, 1]} : vector<8x512xf32> to vector<8x128xf32>
    %233 = arith.negf %232 : vector<8x128xf32>
    %234 = math.exp %233 : vector<8x128xf32>
    %cst_63 = arith.constant 1.000000e+00 : f32
    %235 = vector.broadcast %cst_63 : f32 to vector<8x128xf32>
    %236 = arith.addf %235, %234 : vector<8x128xf32>
    %237 = arith.divf %235, %236 : vector<8x128xf32>
    %238 = arith.mulf %229, %211 : vector<8x128xf32>
    %239 = arith.mulf %223, %231 : vector<8x128xf32>
    %240 = arith.addf %238, %239 : vector<8x128xf32>
    %241 = math.tanh %240 : vector<8x128xf32>
    %242 = arith.mulf %237, %241 : vector<8x128xf32>
    %c0_64 = arith.constant 0 : index
    %c0_65 = arith.constant 0 : index
    %243 = vector.load %arg3[%c0_64, %c0_65] : memref<128x13xf32, #tpu.memory_space<vmem>>, vector<128x13xf32>
    %cst_66 = arith.constant dense<0.000000e+00> : vector<8x13xf32>
    %244 = tpu.matmul %242, %243, %cst_66 {dimension_numbers = #tpu.dot_dimension_numbers<[1], [0], [0], [1], [0, 0, 1, 1], [], []>} : vector<8x128xf32>, vector<128x13xf32>, vector<8x13xf32> -> vector<8x13xf32>
    %c0_67 = arith.constant 0 : index
    %c0_68 = arith.constant 0 : index
    %245 = vector.load %arg4[%c0_67, %c0_68] : memref<1x13xf32, #tpu.memory_space<vmem>>, vector<1x13xf32>
    %246 = vector.broadcast %245 : vector<1x13xf32> to vector<8x13xf32>
    %247 = arith.addf %244, %246 : vector<8x13xf32>
    %248 = vector.extract_strided_slice %247 {offsets = [0, 0], sizes = [2, 13], strides = [1, 1]} : vector<8x13xf32> to vector<2x13xf32>
    %c0_69 = arith.constant 0 : index
    %c0_70 = arith.constant 0 : index
    %249 = vector.load %arg5[%c0_69, %c0_70] : memref<2x13xf32, #tpu.memory_space<vmem>>, vector<2x13xf32>
    tpu.vector_store %arg5[%c0_69, %c0_70], %248 {strides = array<i32>} : memref<2x13xf32, #tpu.memory_space<vmem>>, vector<2x13xf32>,
    return
  }
}

</mosaic_0001>

<llo_original>
// kernel: lstm_model_forward.1
$region0: #{lstm_model_forward.1}
  #allocation0 [shape = 'u32[]', space=smem, size = 0x4, offset = 0x4, fixed_abs, tag = 'smem constant byte address 0x4 - core index']
  #allocation1 [shape = 'u32[144,128]{1,0:T(1,128)}', space=vmem, size = 0x12000, scoped, tag = 'internal scratch']
  #allocation2 [shape = 'f32[64,512]{1,0:T(8,128)}', space=vmem, size = 0x20000, scoped, tag = 'scratch operand']
  %s0 = inlined_call_operand.vmem [shape: s32[64,1], index: 0, kind: input, shape index: {}]
  %s1 = inlined_call_operand.vmem [shape: f32[13,512], index: 1, kind: input, shape index: {}]
  %s2 = inlined_call_operand.vmem [shape: f32[128,512], index: 2, kind: input, shape index: {}]
  %s3 = inlined_call_operand.vmem [shape: f32[128,13], index: 3, kind: input, shape index: {}]
  %s4 = inlined_call_operand.vmem [shape: f32[1,13], index: 4, kind: input, shape index: {}]
  %s5 = inlined_call_operand.hbm [shape: f32[2,13], index: 5, kind: output, shape index: {}]
  %s6 = sld [smem:[#allocation0]]
  $region30: #{lstm_model_forward.1} parent=0
    _
  %s8 = ssub.s32 1, %s6
  %s9 = scalar_select 0, %s8, %s6
  $region1: #{lstm_model_forward.1} parent=0
    #allocation3 [shape = 'u8[1024]{0}', space=vmem, size = 0x400, scoped, tag = 'output window, operand 0, single buffered']
    #allocation4 [shape = 's32[1]{0}', space=sflag, size = 0x4, scoped, tag = 'scoped memory for lstm_model_forward.1']
    %10 = vsyncpa [#allocation4], 0
    // Predicated region
    $region2: #{lstm_model_forward.1} parent=1 // pred_check
      _
    $region3: #{lstm_model_forward.1} parent=1 // pred_check_branch
      %12 = sbr.rel (0) target = $region5
    $region4: #{lstm_model_forward.1} parent=1 // pred_region
      _
    $region5: #{lstm_model_forward.1} parent=1 // pred_fallthru
      _
    // Predicated region
    $region6: #{lstm_model_forward.1} parent=1 // pred_check
      _
    $region7: #{lstm_model_forward.1} parent=1 // pred_check_branch
      %14 = sbr.rel (0) target = $region9
    $region8: #{lstm_model_forward.1} parent=1 // pred_region
      _
    $region9: #{lstm_model_forward.1} parent=1 // pred_fallthru
      _
    // Predicated region
    $region10: #{lstm_model_forward.1} parent=1 // pred_check
      _
    $region11: #{lstm_model_forward.1} parent=1 // pred_check_branch
      %16 = sbr.rel (0) target = $region13
    $region12: #{lstm_model_forward.1} parent=1 // pred_region
      _
    $region13: #{lstm_model_forward.1} parent=1 // pred_fallthru
      _
    // Predicated region
    $region14: #{lstm_model_forward.1} parent=1 // pred_check
      _
    $region15: #{lstm_model_forward.1} parent=1 // pred_check_branch
      %18 = sbr.rel (0) target = $region17
    $region16: #{lstm_model_forward.1} parent=1 // pred_region
      _
    $region17: #{lstm_model_forward.1} parent=1 // pred_fallthru
      _
    // Predicated region
    $region18: #{lstm_model_forward.1} parent=1 // pred_check
      _
    $region19: #{lstm_model_forward.1} parent=1 // pred_check_branch
      %20 = sbr.rel (0) target = $region21
    $region20: #{lstm_model_forward.1} parent=1 // pred_region
      _
    $region21: #{lstm_model_forward.1} parent=1 // pred_fallthru
      _
    %v21 = vlaneseq
    %v22 = vand.u32 %v21, 127
    %v23 = vld [vmem:[%s0] sm:$0xff]
    %v24 = vld [vmem:[%s0 + $0x8] sm:$0xff]
    %v25 = vld [vmem:[%s0 + $0x10] sm:$0xff]
    %v26 = vld [vmem:[%s0 + $0x18] sm:$0xff]
    %v27 = vld [vmem:[%s0 + $0x20] sm:$0xff]
    %v28 = vld [vmem:[%s0 + $0x28] sm:$0xff]
    %v29 = vld [vmem:[%s0 + $0x30] sm:$0xff]
    %v30 = vld [vmem:[%s0 + $0x38] sm:$0xff]
    %31 = vset.pattern.permute.xlu0 0
    %32 = vperm.xlu0 %31, %v23
    %v33 = vpop.permute.xlu0 %32
    %34 = vset.pattern.permute.xlu0 0
    %35 = vperm.xlu0 %34, %v24
    %v36 = vpop.permute.xlu0 %35
    %37 = vset.pattern.permute.xlu0 0
    %38 = vperm.xlu0 %37, %v25
    %v39 = vpop.permute.xlu0 %38
    %40 = vset.pattern.permute.xlu0 0
    %41 = vperm.xlu0 %40, %v26
    %v42 = vpop.permute.xlu0 %41
    %43 = vset.pattern.permute.xlu0 0
    %44 = vperm.xlu0 %43, %v27
    %v45 = vpop.permute.xlu0 %44
    %46 = vset.pattern.permute.xlu0 0
    %47 = vperm.xlu0 %46, %v28
    %v48 = vpop.permute.xlu0 %47
    %49 = vset.pattern.permute.xlu0 0
    %50 = vperm.xlu0 %49, %v29
    %v51 = vpop.permute.xlu0 %50
    %52 = vset.pattern.permute.xlu0 0
    %53 = vperm.xlu0 %52, %v30
    %v54 = vpop.permute.xlu0 %53
    %vm55 = vcmp.eq.s32.totalorder %v22, %v33
    %vm56 = vcmp.eq.s32.totalorder %v22, %v36
    %vm57 = vcmp.eq.s32.totalorder %v22, %v39
    %vm58 = vcmp.eq.s32.totalorder %v22, %v42
    %vm59 = vcmp.eq.s32.totalorder %v22, %v45
    %vm60 = vcmp.eq.s32.totalorder %v22, %v48
    %vm61 = vcmp.eq.s32.totalorder %v22, %v51
    %vm62 = vcmp.eq.s32.totalorder %v22, %v54
    %v63 = vsel %vm55, 1, 0
    %v64 = vsel %vm56, 1, 0
    %v65 = vsel %vm57, 1, 0
    %v66 = vsel %vm58, 1, 0
    %v67 = vsel %vm59, 1, 0
    %v68 = vsel %vm60, 1, 0
    %v69 = vsel %vm61, 1, 0
    %v70 = vsel %vm62, 1, 0
    %v71 = vcvt.s32.f32 %v63
    %v72 = vcvt.s32.f32 %v64
    %v73 = vcvt.s32.f32 %v65
    %v74 = vcvt.s32.f32 %v66
    %v75 = vcvt.s32.f32 %v67
    %v76 = vcvt.s32.f32 %v68
    %v77 = vcvt.s32.f32 %v69
    %v78 = vcvt.s32.f32 %v70
    %v79 = vld [vmem:[%s1] sm:$0xff]
    %v80 = vld [vmem:[%s1 + $0x8] sm:$0xff]
    %v81 = vld [vmem:[%s1 + $0x10] sm:$0xff]
    %v82 = vld [vmem:[%s1 + $0x18] sm:$0xff]
    %v83 = vld [vmem:[%s1 + $0x20] sm:$0x1f]
    %v84 = vld [vmem:[%s1 + $0x28] sm:$0x1f]
    %v85 = vld [vmem:[%s1 + $0x30] sm:$0x1f]
    %v86 = vld [vmem:[%s1 + $0x38] sm:$0x1f]
    %vm87 = vcmask 105472
    %v89 = vsel %vm87, %v71, 0
    %v92 = vsel %vm87, %v72, 0
    %v95 = vsel %vm87, %v73, 0
    %v98 = vsel %vm87, %v74, 0
    %v101 = vsel %vm87, %v75, 0
    %v104 = vsel %vm87, %v76, 0
    %v107 = vsel %vm87, %v77, 0
    %v110 = vsel %vm87, %v78, 0
    %vm112 = vcmask 1044480
    %v114 = vsel %vm112, %v83, 0
    %v117 = vsel %vm112, %v84, 0
    %v120 = vsel %vm112, %v85, 0
    %v123 = vsel %vm112, %v86, 0
    %125 = vmatprep.subr.mxu0 %v80
    %126 = vmatpush1.msra.mxu0 %v79
    %127 = vmatprep.subr.mxu0 %v117
    %128 = vmatpush1.msra.mxu0 %v114
    %129 = vmatprep.subr.mxu0 0.0
    %130 = vmatpush1.msra.mxu0 0.0
    %131 = vmatprep.subr.mxu0 0.0
    %132 = vmatpush1.msra.mxu0 0.0
    %133 = vmatprep.subr.mxu0 0.0
    %134 = vmatpush1.msra.mxu0 0.0
    %135 = vmatprep.subr.mxu0 0.0
    %136 = vmatpush1.msra.mxu0 0.0
    %137 = vmatprep.subr.mxu0 0.0
    %138 = vmatpush1.msra.mxu0 0.0
    %139 = vmatprep.subr.mxu0 0.0
    %140 = vmatpush1.msra.mxu0 0.0
    %141 = vmatprep.subr.mxu0 0.0
    %142 = vmatpush1.msra.mxu0 0.0
    %143 = vmatprep.subr.mxu0 0.0
    %144 = vmatpush1.msra.mxu0 0.0
    %145 = vmatprep.subr.mxu0 0.0
    %146 = vmatpush1.msra.mxu0 0.0
    %147 = vmatprep.subr.mxu0 0.0
    %148 = vmatpush1.msra.mxu0 0.0
    %149 = vmatprep.subr.mxu0 0.0
    %150 = vmatpush1.msra.mxu0 0.0
    %151 = vmatprep.subr.mxu0 0.0
    %152 = vmatpush1.msra.mxu0 0.0
    %153 = vmatprep.subr.mxu0 0.0
    %154 = vmatpush1.msra.mxu0 0.0
    %155 = vmatprep.subr.mxu0 0.0
    %156 = vmatpush1.msra.mxu0 0.0
    %157 = vmatprep.subr.mxu0 0.0
    %158 = vmatpush1.msra.mxu0 0.0
    %159 = vmatprep.subr.mxu0 0.0
    %160 = vmatpush1.msra.mxu0 0.0
    %161 = vmatprep.subr.mxu0 0.0
    %162 = vmatpush1.msra.mxu0 0.0
    %163 = vmatprep.subr.mxu0 0.0
    %164 = vmatpush1.msra.mxu0 0.0
    %165 = vmatprep.subr.mxu0 0.0
    %166 = vmatpush1.msra.mxu0 0.0
    %167 = vmatprep.subr.mxu0 0.0
    %168 = vmatpush1.msra.mxu0 0.0
    %169 = vmatprep.subr.mxu0 0.0
    %170 = vmatpush1.msra.mxu0 0.0
    %171 = vmatprep.subr.mxu0 0.0
    %172 = vmatpush1.msra.mxu0 0.0
    %173 = vmatprep.subr.mxu0 0.0
    %174 = vmatpush1.msra.mxu0 0.0
    %175 = vmatprep.subr.mxu0 0.0
    %176 = vmatpush1.msra.mxu0 0.0
    %177 = vmatprep.subr.mxu0 0.0
    %178 = vmatpush1.msra.mxu0 0.0
    %179 = vmatprep.subr.mxu0 0.0
    %180 = vmatpush1.msra.mxu0 0.0
    %181 = vmatprep.subr.mxu0 0.0
    %182 = vmatpush1.msra.mxu0 0.0
    %183 = vmatprep.subr.mxu0 0.0
    %184 = vmatpush1.msra.mxu0 0.0
    %185 = vmatprep.subr.mxu0 0.0
    %186 = vmatpush1.msra.mxu0 0.0
    %187 = vmatprep.subr.mxu0 0.0
    %188 = vmatpush1.msra.mxu0 0.0
    %189 = vmatprep.mubr.f32.mxu0 0.0
    %190 = vmatmul.mubr.f32.gmra.mrb[0].mxu0 %v89
    %v191 = vpop.f32.mrb[0].mxu0
    %v192 = vadd.f32 0.0, %v191
    %v193 = vpop.f32.mrb[0].mxu0
    %v194 = vadd.f32 0.0, %v193
    %195 = vmatprep.mubr.f32.mxu0 0.0
    %196 = vmatmul.mubr.f32.gmra.mrb[0].mxu0 %v92
    %v197 = vpop.f32.mrb[0].mxu0
    %v198 = vadd.f32 0.0, %v197
    %v199 = vpop.f32.mrb[0].mxu0
    %v200 = vadd.f32 0.0, %v199
    %201 = vmatprep.mubr.f32.mxu0 0.0
    %202 = vmatmul.mubr.f32.gmra.mrb[0].mxu0 %v95
    %v203 = vpop.f32.mrb[0].mxu0
    %v204 = vadd.f32 0.0, %v203
    %v205 = vpop.f32.mrb[0].mxu0
    %v206 = vadd.f32 0.0, %v205
    %207 = vmatprep.mubr.f32.mxu0 0.0
    %208 = vmatmul.mubr.f32.gmra.mrb[0].mxu0 %v98
    %v209 = vpop.f32.mrb[0].mxu0
    %v210 = vadd.f32 0.0, %v209
    %v211 = vpop.f32.mrb[0].mxu0
    %v212 = vadd.f32 0.0, %v211
    %213 = vmatprep.mubr.f32.mxu0 0.0
    %214 = vmatmul.mubr.f32.gmra.mrb[0].mxu0 %v101
    %v215 = vpop.f32.mrb[0].mxu0
    %v216 = vadd.f32 0.0, %v215
    %v217 = vpop.f32.mrb[0].mxu0
    %v218 = vadd.f32 0.0, %v217
    %219 = vmatprep.mubr.f32.mxu0 0.0
    %220 = vmatmul.mubr.f32.gmra.mrb[0].mxu0 %v104
    %v221 = vpop.f32.mrb[0].mxu0
    %v222 = vadd.f32 0.0, %v221
    %v223 = vpop.f32.mrb[0].mxu0
    %v224 = vadd.f32 0.0, %v223
    %225 = vmatprep.mubr.f32.mxu0 0.0
    %226 = vmatmul.mubr.f32.gmra.mrb[0].mxu0 %v107
    %v227 = vpop.f32.mrb[0].mxu0
    %v228 = vadd.f32 0.0, %v227
    %v229 = vpop.f32.mrb[0].mxu0
    %v230 = vadd.f32 0.0, %v229
    %231 = vmatprep.mubr.f32.mxu0 0.0
    %232 = vmatmul.mubr.f32.gmra.mrb[0].mxu0 %v110
    %v233 = vpop.f32.mrb[0].mxu0
    %v234 = vadd.f32 0.0, %v233
    %v235 = vpop.f32.mrb[0].mxu0
    %v236 = vadd.f32 0.0, %v235
    %237 = vdwg.mxu0
    %238 = vmatprep.subr.mxu0 %v82
    %239 = vmatpush1.msra.mxu0 %v81
    %240 = vmatprep.subr.mxu0 %v123
    %241 = vmatpush1.msra.mxu0 %v120
    %242 = vmatprep.subr.mxu0 0.0
    %243 = vmatpush1.msra.mxu0 0.0
    %244 = vmatprep.subr.mxu0 0.0
    %245 = vmatpush1.msra.mxu0 0.0
    %246 = vmatprep.subr.mxu0 0.0
    %247 = vmatpush1.msra.mxu0 0.0
    %248 = vmatprep.subr.mxu0 0.0
    %249 = vmatpush1.msra.mxu0 0.0
    %250 = vmatprep.subr.mxu0 0.0
    %251 = vmatpush1.msra.mxu0 0.0
    %252 = vmatprep.subr.mxu0 0.0
    %253 = vmatpush1.msra.mxu0 0.0
    %254 = vmatprep.subr.mxu0 0.0
    %255 = vmatpush1.msra.mxu0 0.0
    %256 = vmatprep.subr.mxu0 0.0
    %257 = vmatpush1.msra.mxu0 0.0
    %258 = vmatprep.subr.mxu0 0.0
    %259 = vmatpush1.msra.mxu0 0.0
    %260 = vmatprep.subr.mxu0 0.0
    %261 = vmatpush1.msra.mxu0 0.0
    %262 = vmatprep.subr.mxu0 0.0
    %263 = vmatpush1.msra.mxu0 0.0
    %264 = vmatprep.subr.mxu0 0.0
    %265 = vmatpush1.msra.mxu0 0.0
    %266 = vmatprep.subr.mxu0 0.0
    %267 = vmatpush1.msra.mxu0 0.0
    %268 = vmatprep.subr.mxu0 0.0
    %269 = vmatpush1.msra.mxu0 0.0
    %270 = vmatprep.subr.mxu0 0.0
    %271 = vmatpush1.msra.mxu0 0.0
    %272 = vmatprep.subr.mxu0 0.0
    %273 = vmatpush1.msra.mxu0 0.0
    %274 = vmatprep.subr.mxu0 0.0
    %275 = vmatpush1.msra.mxu0 0.0
    %276 = vmatprep.subr.mxu0 0.0
    %277 = vmatpush1.msra.mxu0 0.0
    %278 = vmatprep.subr.mxu0 0.0
    %279 = vmatpush1.msra.mxu0 0.0
    %280 = vmatprep.subr.mxu0 0.0
    %281 = vmatpush1.msra.mxu0 0.0
    %282 = vmatprep.subr.mxu0 0.0
    %283 = vmatpush1.msra.mxu0 0.0
    %284 = vmatprep.subr.mxu0 0.0
    %285 = vmatpush1.msra.mxu0 0.0
    %286 = vmatprep.subr.mxu0 0.0
    %287 = vmatpush1.msra.mxu0 0.0
    %288 = vmatprep.subr.mxu0 0.0
    %289 = vmatpush1.msra.mxu0 0.0
    %290 = vmatprep.subr.mxu0 0.0
    %291 = vmatpush1.msra.mxu0 0.0
    %292 = vmatprep.subr.mxu0 0.0
    %293 = vmatpush1.msra.mxu0 0.0
    %294 = vmatprep.subr.mxu0 0.0
    %295 = vmatpush1.msra.mxu0 0.0
    %296 = vmatprep.subr.mxu0 0.0
    %297 = vmatpush1.msra.mxu0 0.0
    %298 = vmatprep.subr.mxu0 0.0
    %299 = vmatpush1.msra.mxu0 0.0
    %300 = vmatprep.subr.mxu0 0.0
    %301 = vmatpush1.msra.mxu0 0.0
    %302 = vmatprep.mubr.f32.mxu0 0.0
    %303 = vmatmul.mubr.f32.gmra.mrb[0].mxu0 %v89
    %v304 = vpop.f32.mrb[0].mxu0
    %v305 = vadd.f32 0.0, %v304
    %v306 = vpop.f32.mrb[0].mxu0
    %v307 = vadd.f32 0.0, %v306
    %308 = vmatprep.mubr.f32.mxu0 0.0
    %309 = vmatmul.mubr.f32.gmra.mrb[0].mxu0 %v92
    %v310 = vpop.f32.mrb[0].mxu0
    %v311 = vadd.f32 0.0, %v310
    %v312 = vpop.f32.mrb[0].mxu0
    %v313 = vadd.f32 0.0, %v312
    %314 = vmatprep.mubr.f32.mxu0 0.0
    %315 = vmatmul.mubr.f32.gmra.mrb[0].mxu0 %v95
    %v316 = vpop.f32.mrb[0].mxu0
    %v317 = vadd.f32 0.0, %v316
    %v318 = vpop.f32.mrb[0].mxu0
    %v319 = vadd.f32 0.0, %v318
    %320 = vmatprep.mubr.f32.mxu0 0.0
    %321 = vmatmul.mubr.f32.gmra.mrb[0].mxu0 %v98
    %v322 = vpop.f32.mrb[0].mxu0
    %v323 = vadd.f32 0.0, %v322
    %v324 = vpop.f32.mrb[0].mxu0
    %v325 = vadd.f32 0.0, %v324
    %326 = vmatprep.mubr.f32.mxu0 0.0
    %327 = vmatmul.mubr.f32.gmra.mrb[0].mxu0 %v101
    %v328 = vpop.f32.mrb[0].mxu0
    %v329 = vadd.f32 0.0, %v328
    %v330 = vpop.f32.mrb[0].mxu0
    %v331 = vadd.f32 0.0, %v330
    %332 = vmatprep.mubr.f32.mxu0 0.0
    %333 = vmatmul.mubr.f32.gmra.mrb[0].mxu0 %v104
    %v334 = vpop.f32.mrb[0].mxu0
    %v335 = vadd.f32 0.0, %v334
    %v336 = vpop.f32.mrb[0].mxu0
    %v337 = vadd.f32 0.0, %v336
    %338 = vmatprep.mubr.f32.mxu0 0.0
    %339 = vmatmul.mubr.f32.gmra.mrb[0].mxu0 %v107
    %v340 = vpop.f32.mrb[0].mxu0
    %v341 = vadd.f32 0.0, %v340
    %v342 = vpop.f32.mrb[0].mxu0
    %v343 = vadd.f32 0.0, %v342
    %344 = vmatprep.mubr.f32.mxu0 0.0
    %345 = vmatmul.mubr.f32.gmra.mrb[0].mxu0 %v110
    %v346 = vpop.f32.mrb[0].mxu0
    %v347 = vadd.f32 0.0, %v346
    %v348 = vpop.f32.mrb[0].mxu0
    %v349 = vadd.f32 0.0, %v348
    %350 = vdwg.mxu0
    %351 = vst [vmem:[#allocation2] sm:$0xff] %v192
    %352 = vst [vmem:[#allocation2 + $0x8] sm:$0xff] %v194
    %353 = vst [vmem:[#allocation2 + $0x10] sm:$0xff] %v305
    %354 = vst [vmem:[#allocation2 + $0x18] sm:$0xff] %v307
    %355 = vst [vmem:[#allocation2 + $0x20] sm:$0xff] %v198
    %356 = vst [vmem:[#allocation2 + $0x28] sm:$0xff] %v200
    %357 = vst [vmem:[#allocation2 + $0x30] sm:$0xff] %v311
    %358 = vst [vmem:[#allocation2 + $0x38] sm:$0xff] %v313
    %359 = vst [vmem:[#allocation2 + $0x40] sm:$0xff] %v204
    %360 = vst [vmem:[#allocation2 + $0x48] sm:$0xff] %v206
    %361 = vst [vmem:[#allocation2 + $0x50] sm:$0xff] %v317
    %362 = vst [vmem:[#allocation2 + $0x58] sm:$0xff] %v319
    %363 = vst [vmem:[#allocation2 + $0x60] sm:$0xff] %v210
    %364 = vst [vmem:[#allocation2 + $0x68] sm:$0xff] %v212
    %365 = vst [vmem:[#allocation2 + $0x70] sm:$0xff] %v323
    %366 = vst [vmem:[#allocation2 + $0x78] sm:$0xff] %v325
    %367 = vst [vmem:[#allocation2 + $0x80] sm:$0xff] %v216
    %368 = vst [vmem:[#allocation2 + $0x88] sm:$0xff] %v218
    %369 = vst [vmem:[#allocation2 + $0x90] sm:$0xff] %v329
    %370 = vst [vmem:[#allocation2 + $0x98] sm:$0xff] %v331
    %371 = vst [vmem:[#allocation2 + $0xa0] sm:$0xff] %v222
    %372 = vst [vmem:[#allocation2 + $0xa8] sm:$0xff] %v224
    %373 = vst [vmem:[#allocation2 + $0xb0] sm:$0xff] %v335
    %374 = vst [vmem:[#allocation2 + $0xb8] sm:$0xff] %v337
    %375 = vst [vmem:[#allocation2 + $0xc0] sm:$0xff] %v228
    %376 = vst [vmem:[#allocation2 + $0xc8] sm:$0xff] %v230
    %377 = vst [vmem:[#allocation2 + $0xd0] sm:$0xff] %v341
    %378 = vst [vmem:[#allocation2 + $0xd8] sm:$0xff] %v343
    %379 = vst [vmem:[#allocation2 + $0xe0] sm:$0xff] %v234
    %380 = vst [vmem:[#allocation2 + $0xe8] sm:$0xff] %v236
    %381 = vst [vmem:[#allocation2 + $0xf0] sm:$0xff] %v347
    %382 = vst [vmem:[#allocation2 + $0xf8] sm:$0xff] %v349
    %v383 = vld [vmem:[#allocation2] sm:$0xff]
    %v384 = vld [vmem:[#allocation2 + $0x8] sm:$0xff]
    %v385 = vld [vmem:[#allocation2 + $0x10] sm:$0xff]
    %v386 = vld [vmem:[#allocation2 + $0x18] sm:$0xff]
    %v387 = vld [vmem:[%s2] sm:$0xff]
    %v388 = vld [vmem:[%s2 + $0x8] sm:$0xff]
    %v389 = vld [vmem:[%s2 + $0x10] sm:$0xff]
    %v390 = vld [vmem:[%s2 + $0x18] sm:$0xff]
    %v391 = vld [vmem:[%s2 + $0x20] sm:$0xff]
    %v392 = vld [vmem:[%s2 + $0x28] sm:$0xff]
    %v393 = vld [vmem:[%s2 + $0x30] sm:$0xff]
    %v394 = vld [vmem:[%s2 + $0x38] sm:$0xff]
    %v395 = vld [vmem:[%s2 + $0x40] sm:$0xff]
    %v396 = vld [vmem:[%s2 + $0x48] sm:$0xff]
    %v397 = vld [vmem:[%s2 + $0x50] sm:$0xff]
    %v398 = vld [vmem:[%s2 + $0x58] sm:$0xff]
    %v399 = vld [vmem:[%s2 + $0x60] sm:$0xff]
    %v400 = vld [vmem:[%s2 + $0x68] sm:$0xff]
    %v401 = vld [vmem:[%s2 + $0x70] sm:$0xff]
    %v402 = vld [vmem:[%s2 + $0x78] sm:$0xff]
    %v403 = vld [vmem:[%s2 + $0x80] sm:$0xff]
    %v404 = vld [vmem:[%s2 + $0x88] sm:$0xff]
    %v405 = vld [vmem:[%s2 + $0x90] sm:$0xff]
    %v406 = vld [vmem:[%s2 + $0x98] sm:$0xff]
    %v407 = vld [vmem:[%s2 + $0xa0] sm:$0xff]
    %v408 = vld [vmem:[%s2 + $0xa8] sm:$0xff]
    %v409 = vld [vmem:[%s2 + $0xb0] sm:$0xff]
    %v410 = vld [vmem:[%s2 + $0xb8] sm:$0xff]
    %v411 = vld [vmem:[%s2 + $0xc0] sm:$0xff]
    %v412 = vld [vmem:[%s2 + $0xc8] sm:$0xff]
    %v413 = vld [vmem:[%s2 + $0xd0] sm:$0xff]
    %v414 = vld [vmem:[%s2 + $0xd8] sm:$0xff]
    %v415 = vld [vmem:[%s2 + $0xe0] sm:$0xff]
    %v416 = vld [vmem:[%s2 + $0xe8] sm:$0xff]
    %v417 = vld [vmem:[%s2 + $0xf0] sm:$0xff]
    %v418 = vld [vmem:[%s2 + $0xf8] sm:$0xff]
    %v419 = vld [vmem:[%s2 + $0x100] sm:$0xff]
    %v420 = vld [vmem:[%s2 + $0x108] sm:$0xff]
    %v421 = vld [vmem:[%s2 + $0x110] sm:$0xff]
    %v422 = vld [vmem:[%s2 + $0x118] sm:$0xff]
    %v423 = vld [vmem:[%s2 + $0x120] sm:$0xff]
    %v424 = vld [vmem:[%s2 + $0x128] sm:$0xff]
    %v425 = vld [vmem:[%s2 + $0x130] sm:$0xff]
    %v426 = vld [vmem:[%s2 + $0x138] sm:$0xff]
    %v427 = vld [vmem:[%s2 + $0x140] sm:$0xff]
    %v428 = vld [vmem:[%s2 + $0x148] sm:$0xff]
    %v429 = vld [vmem:[%s2 + $0x150] sm:$0xff]
    %v430 = vld [vmem:[%s2 + $0x158] sm:$0xff]
    %v431 = vld [vmem:[%s2 + $0x160] sm:$0xff]
    %v432 = vld [vmem:[%s2 + $0x168] sm:$0xff]
    %v433 = vld [vmem:[%s2 + $0x170] sm:$0xff]
    %v434 = vld [vmem:[%s2 + $0x178] sm:$0xff]
    %v435 = vld [vmem:[%s2 + $0x180] sm:$0xff]
    %v436 = vld [vmem:[%s2 + $0x188] sm:$0xff]
    %v437 = vld [vmem:[%s2 + $0x190] sm:$0xff]
    %v438 = vld [vmem:[%s2 + $0x198] sm:$0xff]
    %v439 = vld [vmem:[%s2 + $0x1a0] sm:$0xff]
    %v440 = vld [vmem:[%s2 + $0x1a8] sm:$0xff]
    %v441 = vld [vmem:[%s2 + $0x1b0] sm:$0xff]
    %v442 = vld [vmem:[%s2 + $0x1b8] sm:$0xff]
    %v443 = vld [vmem:[%s2 + $0x1c0] sm:$0xff]
    %v444 = vld [vmem:[%s2 + $0x1c8] sm:$0xff]
    %v445 = vld [vmem:[%s2 + $0x1d0] sm:$0xff]
    %v446 = vld [vmem:[%s2 + $0x1d8] sm:$0xff]
    %v447 = vld [vmem:[%s2 + $0x1e0] sm:$0xff]
    %v448 = vld [vmem:[%s2 + $0x1e8] sm:$0xff]
    %v449 = vld [vmem:[%s2 + $0x1f0] sm:$0xff]
    %v450 = vld [vmem:[%s2 + $0x1f8] sm:$0xff]
    %451 = vmatprep.subr.mxu0 %v388
    %452 = vmatpush1.msra.mxu0 %v387
    %453 = vmatprep.subr.mxu0 %v392
    %454 = vmatpush1.msra.mxu0 %v391
    %455 = vmatprep.subr.mxu0 %v396
    %456 = vmatpush1.msra.mxu0 %v395
    %457 = vmatprep.subr.mxu0 %v400
    %458 = vmatpush1.msra.mxu0 %v399
    %459 = vmatprep.subr.mxu0 %v404
    %460 = vmatpush1.msra.mxu0 %v403
    %461 = vmatprep.subr.mxu0 %v408
    %462 = vmatpush1.msra.mxu0 %v407
    %463 = vmatprep.subr.mxu0 %v412
    %464 = vmatpush1.msra.mxu0 %v411
    %465 = vmatprep.subr.mxu0 %v416
    %466 = vmatpush1.msra.mxu0 %v415
    %467 = vmatprep.subr.mxu0 %v420
    %468 = vmatpush1.msra.mxu0 %v419
    %469 = vmatprep.subr.mxu0 %v424
    %470 = vmatpush1.msra.mxu0 %v423
    %471 = vmatprep.subr.mxu0 %v428
    %472 = vmatpush1.msra.mxu0 %v427
    %473 = vmatprep.subr.mxu0 %v432
    %474 = vmatpush1.msra.mxu0 %v431
    %475 = vmatprep.subr.mxu0 %v436
    %476 = vmatpush1.msra.mxu0 %v435
    %477 = vmatprep.subr.mxu0 %v440
    %478 = vmatpush1.msra.mxu0 %v439
    %479 = vmatprep.subr.mxu0 %v444
    %480 = vmatpush1.msra.mxu0 %v443
    %481 = vmatprep.subr.mxu0 %v448
    %482 = vmatpush1.msra.mxu0 %v447
    %483 = vmatprep.subr.mxu0 0.0
    %484 = vmatpush1.msra.mxu0 0.0
    %485 = vmatprep.subr.mxu0 0.0
    %486 = vmatpush1.msra.mxu0 0.0
    %487 = vmatprep.subr.mxu0 0.0
    %488 = vmatpush1.msra.mxu0 0.0
    %489 = vmatprep.subr.mxu0 0.0
    %490 = vmatpush1.msra.mxu0 0.0
    %491 = vmatprep.subr.mxu0 0.0
    %492 = vmatpush1.msra.mxu0 0.0
    %493 = vmatprep.subr.mxu0 0.0
    %494 = vmatpush1.msra.mxu0 0.0
    %495 = vmatprep.subr.mxu0 0.0
    %496 = vmatpush1.msra.mxu0 0.0
    %497 = vmatprep.subr.mxu0 0.0
    %498 = vmatpush1.msra.mxu0 0.0
    %499 = vmatprep.subr.mxu0 0.0
    %500 = vmatpush1.msra.mxu0 0.0
    %501 = vmatprep.subr.mxu0 0.0
    %502 = vmatpush1.msra.mxu0 0.0
    %503 = vmatprep.subr.mxu0 0.0
    %504 = vmatpush1.msra.mxu0 0.0
    %505 = vmatprep.subr.mxu0 0.0
    %506 = vmatpush1.msra.mxu0 0.0
    %507 = vmatprep.subr.mxu0 0.0
    %508 = vmatpush1.msra.mxu0 0.0
    %509 = vmatprep.subr.mxu0 0.0
    %510 = vmatpush1.msra.mxu0 0.0
    %511 = vmatprep.subr.mxu0 0.0
    %512 = vmatpush1.msra.mxu0 0.0
    %513 = vmatprep.subr.mxu0 0.0
    %514 = vmatpush1.msra.mxu0 0.0
    %515 = vmatprep.mubr.f32.mxu0 0.0
    %516 = vmatmul.mubr.f32.gmra.mrb[0].mxu0 0.0
    %v517 = vpop.f32.mrb[0].mxu0
    %v518 = vadd.f32 0.0, %v517
    %v519 = vpop.f32.mrb[0].mxu0
    %v520 = vadd.f32 0.0, %v519
    %521 = vdwg.mxu0
    %522 = vmatprep.subr.mxu0 %v390
    %523 = vmatpush1.msra.mxu0 %v389
    %524 = vmatprep.subr.mxu0 %v394
    %525 = vmatpush1.msra.mxu0 %v393
    %526 = vmatprep.subr.mxu0 %v398
    %527 = vmatpush1.msra.mxu0 %v397
    %528 = vmatprep.subr.mxu0 %v402
    %529 = vmatpush1.msra.mxu0 %v401
    %530 = vmatprep.subr.mxu0 %v406
    %531 = vmatpush1.msra.mxu0 %v405
    %532 = vmatprep.subr.mxu0 %v410
    %533 = vmatpush1.msra.mxu0 %v409
    %534 = vmatprep.subr.mxu0 %v414
    %535 = vmatpush1.msra.mxu0 %v413
    %536 = vmatprep.subr.mxu0 %v418
    %537 = vmatpush1.msra.mxu0 %v417
    %538 = vmatprep.subr.mxu0 %v422
    %539 = vmatpush1.msra.mxu0 %v421
    %540 = vmatprep.subr.mxu0 %v426
    %541 = vmatpush1.msra.mxu0 %v425
    %542 = vmatprep.subr.mxu0 %v430
    %543 = vmatpush1.msra.mxu0 %v429
    %544 = vmatprep.subr.mxu0 %v434
    %545 = vmatpush1.msra.mxu0 %v433
    %546 = vmatprep.subr.mxu0 %v438
    %547 = vmatpush1.msra.mxu0 %v437
    %548 = vmatprep.subr.mxu0 %v442
    %549 = vmatpush1.msra.mxu0 %v441
    %550 = vmatprep.subr.mxu0 %v446
    %551 = vmatpush1.msra.mxu0 %v445
    %552 = vmatprep.subr.mxu0 %v450
    %553 = vmatpush1.msra.mxu0 %v449
    %554 = vmatprep.subr.mxu0 0.0
    %555 = vmatpush1.msra.mxu0 0.0
    %556 = vmatprep.subr.mxu0 0.0
    %557 = vmatpush1.msra.mxu0 0.0
    %558 = vmatprep.subr.mxu0 0.0
    %559 = vmatpush1.msra.mxu0 0.0
    %560 = vmatprep.subr.mxu0 0.0
    %561 = vmatpush1.msra.mxu0 0.0
    %562 = vmatprep.subr.mxu0 0.0
    %563 = vmatpush1.msra.mxu0 0.0
    %564 = vmatprep.subr.mxu0 0.0
    %565 = vmatpush1.msra.mxu0 0.0
    %566 = vmatprep.subr.mxu0 0.0
    %567 = vmatpush1.msra.mxu0 0.0
    %568 = vmatprep.subr.mxu0 0.0
    %569 = vmatpush1.msra.mxu0 0.0
    %570 = vmatprep.subr.mxu0 0.0
    %571 = vmatpush1.msra.mxu0 0.0
    %572 = vmatprep.subr.mxu0 0.0
    %573 = vmatpush1.msra.mxu0 0.0
    %574 = vmatprep.subr.mxu0 0.0
    %575 = vmatpush1.msra.mxu0 0.0
    %576 = vmatprep.subr.mxu0 0.0
    %577 = vmatpush1.msra.mxu0 0.0
    %578 = vmatprep.subr.mxu0 0.0
    %579 = vmatpush1.msra.mxu0 0.0
    %580 = vmatprep.subr.mxu0 0.0
    %581 = vmatpush1.msra.mxu0 0.0
    %582 = vmatprep.subr.mxu0 0.0
    %583 = vmatpush1.msra.mxu0 0.0
    %584 = vmatprep.subr.mxu0 0.0
    %585 = vmatpush1.msra.mxu0 0.0
    %586 = vmatprep.mubr.f32.mxu0 0.0
    %587 = vmatmul.mubr.f32.gmra.mrb[0].mxu0 0.0
    %v588 = vpop.f32.mrb[0].mxu0
    %v589 = vadd.f32 0.0, %v588
    %v590 = vpop.f32.mrb[0].mxu0
    %v591 = vadd.f32 0.0, %v590
    %592 = vdwg.mxu0
    %v593 = vadd.f32 %v383, %v518
    %v594 = vadd.f32 %v384, %v520
    %v595 = vadd.f32 %v385, %v589
    %v596 = vadd.f32 %v386, %v591
    %v597 = vxor.u32 %v593, 2147483648
    %v598 = vmul.f32 %v597, 1.442695
    %v599 = vpow.pop %v598
    %v600 = vadd.f32 %v599, 1.0
    %v601 = vrcp.pop %v600
    %v602 = vmul.f32 1.0, %v601
    %v603 = vxor.u32 %v594, 2147483648
    %v604 = vmul.f32 %v603, 1.442695
    %v605 = vpow.pop %v604
    %v606 = vadd.f32 %v605, 1.0
    %v607 = vrcp.pop %v606
    %v608 = vmul.f32 1.0, %v607
    %v609 = vtanh.pop %v595
    %v610 = vxor.u32 %v596, 2147483648
    %v611 = vmul.f32 %v610, 1.442695
    %v612 = vpow.pop %v611
    %v613 = vadd.f32 %v612, 1.0
    %v614 = vrcp.pop %v613
    %v615 = vmul.f32 1.0, %v614
    %v616 = vmul.f32 %v608, 0.0
    %v617 = vmul.f32 %v602, %v609
    %v618 = vadd.f32 %v616, %v617
    %v619 = vtanh.pop %v618
    %v620 = vmul.f32 %v615, %v619
    %v621 = vld [vmem:[#allocation2 + $0x20] sm:$0xff]
    %v622 = vld [vmem:[#allocation2 + $0x28] sm:$0xff]
    %v623 = vld [vmem:[#allocation2 + $0x30] sm:$0xff]
    %v624 = vld [vmem:[#allocation2 + $0x38] sm:$0xff]
    %625 = vmatprep.subr.mxu0 %v388
    %626 = vmatpush1.msra.mxu0 %v387
    %627 = vmatprep.subr.mxu0 %v392
    %628 = vmatpush1.msra.mxu0 %v391
    %629 = vmatprep.subr.mxu0 %v396
    %630 = vmatpush1.msra.mxu0 %v395
    %631 = vmatprep.subr.mxu0 %v400
    %632 = vmatpush1.msra.mxu0 %v399
    %633 = vmatprep.subr.mxu0 %v404
    %634 = vmatpush1.msra.mxu0 %v403
    %635 = vmatprep.subr.mxu0 %v408
    %636 = vmatpush1.msra.mxu0 %v407
    %637 = vmatprep.subr.mxu0 %v412
    %638 = vmatpush1.msra.mxu0 %v411
    %639 = vmatprep.subr.mxu0 %v416
    %640 = vmatpush1.msra.mxu0 %v415
    %641 = vmatprep.subr.mxu0 %v420
    %642 = vmatpush1.msra.mxu0 %v419
    %643 = vmatprep.subr.mxu0 %v424
    %644 = vmatpush1.msra.mxu0 %v423
    %645 = vmatprep.subr.mxu0 %v428
    %646 = vmatpush1.msra.mxu0 %v427
    %647 = vmatprep.subr.mxu0 %v432
    %648 = vmatpush1.msra.mxu0 %v431
    %649 = vmatprep.subr.mxu0 %v436
    %650 = vmatpush1.msra.mxu0 %v435
    %651 = vmatprep.subr.mxu0 %v440
    %652 = vmatpush1.msra.mxu0 %v439
    %653 = vmatprep.subr.mxu0 %v444
    %654 = vmatpush1.msra.mxu0 %v443
    %655 = vmatprep.subr.mxu0 %v448
    %656 = vmatpush1.msra.mxu0 %v447
    %657 = vmatprep.subr.mxu0 0.0
    %658 = vmatpush1.msra.mxu0 0.0
    %659 = vmatprep.subr.mxu0 0.0
    %660 = vmatpush1.msra.mxu0 0.0
    %661 = vmatprep.subr.mxu0 0.0
    %662 = vmatpush1.msra.mxu0 0.0
    %663 = vmatprep.subr.mxu0 0.0
    %664 = vmatpush1.msra.mxu0 0.0
    %665 = vmatprep.subr.mxu0 0.0
    %666 = vmatpush1.msra.mxu0 0.0
    %667 = vmatprep.subr.mxu0 0.0
    %668 = vmatpush1.msra.mxu0 0.0
    %669 = vmatprep.subr.mxu0 0.0
    %670 = vmatpush1.msra.mxu0 0.0
    %671 = vmatprep.subr.mxu0 0.0
    %672 = vmatpush1.msra.mxu0 0.0
    %673 = vmatprep.subr.mxu0 0.0
    %674 = vmatpush1.msra.mxu0 0.0
    %675 = vmatprep.subr.mxu0 0.0
    %676 = vmatpush1.msra.mxu0 0.0
    %677 = vmatprep.subr.mxu0 0.0
    %678 = vmatpush1.msra.mxu0 0.0
    %679 = vmatprep.subr.mxu0 0.0
    %680 = vmatpush1.msra.mxu0 0.0
    %681 = vmatprep.subr.mxu0 0.0
    %682 = vmatpush1.msra.mxu0 0.0
    %683 = vmatprep.subr.mxu0 0.0
    %684 = vmatpush1.msra.mxu0 0.0
    %685 = vmatprep.subr.mxu0 0.0
    %686 = vmatpush1.msra.mxu0 0.0
    %687 = vmatprep.subr.mxu0 0.0
    %688 = vmatpush1.msra.mxu0 0.0
    %689 = vmatprep.mubr.f32.mxu0 0.0
    %690 = vmatmul.mubr.f32.gmra.mrb[0].mxu0 %v620
    %v691 = vpop.f32.mrb[0].mxu0
    %v692 = vadd.f32 0.0, %v691
    %v693 = vpop.f32.mrb[0].mxu0
    %v694 = vadd.f32 0.0, %v693
    %695 = vdwg.mxu0
    %696 = vmatprep.subr.mxu0 %v390
    %697 = vmatpush1.msra.mxu0 %v389
    %698 = vmatprep.subr.mxu0 %v394
    %699 = vmatpush1.msra.mxu0 %v393
    %700 = vmatprep.subr.mxu0 %v398
    %701 = vmatpush1.msra.mxu0 %v397
    %702 = vmatprep.subr.mxu0 %v402
    %703 = vmatpush1.msra.mxu0 %v401
    %704 = vmatprep.subr.mxu0 %v406
    %705 = vmatpush1.msra.mxu0 %v405
    %706 = vmatprep.subr.mxu0 %v410
    %707 = vmatpush1.msra.mxu0 %v409
    %708 = vmatprep.subr.mxu0 %v414
    %709 = vmatpush1.msra.mxu0 %v413
    %710 = vmatprep.subr.mxu0 %v418
    %711 = vmatpush1.msra.mxu0 %v417
    %712 = vmatprep.subr.mxu0 %v422
    %713 = vmatpush1.msra.mxu0 %v421
    %714 = vmatprep.subr.mxu0 %v426
    %715 = vmatpush1.msra.mxu0 %v425
    %716 = vmatprep.subr.mxu0 %v430
    %717 = vmatpush1.msra.mxu0 %v429
    %718 = vmatprep.subr.mxu0 %v434
    %719 = vmatpush1.msra.mxu0 %v433
    %720 = vmatprep.subr.mxu0 %v438
    %721 = vmatpush1.msra.mxu0 %v437
    %722 = vmatprep.subr.mxu0 %v442
    %723 = vmatpush1.msra.mxu0 %v441
    %724 = vmatprep.subr.mxu0 %v446
    %725 = vmatpush1.msra.mxu0 %v445
    %726 = vmatprep.subr.mxu0 %v450
    %727 = vmatpush1.msra.mxu0 %v449
    %728 = vmatprep.subr.mxu0 0.0
    %729 = vmatpush1.msra.mxu0 0.0
    %730 = vmatprep.subr.mxu0 0.0
    %731 = vmatpush1.msra.mxu0 0.0
    %732 = vmatprep.subr.mxu0 0.0
    %733 = vmatpush1.msra.mxu0 0.0
    %734 = vmatprep.subr.mxu0 0.0
    %735 = vmatpush1.msra.mxu0 0.0
    %736 = vmatprep.subr.mxu0 0.0
    %737 = vmatpush1.msra.mxu0 0.0
    %738 = vmatprep.subr.mxu0 0.0
    %739 = vmatpush1.msra.mxu0 0.0
    %740 = vmatprep.subr.mxu0 0.0
    %741 = vmatpush1.msra.mxu0 0.0
    %742 = vmatprep.subr.mxu0 0.0
    %743 = vmatpush1.msra.mxu0 0.0
    %744 = vmatprep.subr.mxu0 0.0
    %745 = vmatpush1.msra.mxu0 0.0
    %746 = vmatprep.subr.mxu0 0.0
    %747 = vmatpush1.msra.mxu0 0.0
    %748 = vmatprep.subr.mxu0 0.0
    %749 = vmatpush1.msra.mxu0 0.0
    %750 = vmatprep.subr.mxu0 0.0
    %751 = vmatpush1.msra.mxu0 0.0
    %752 = vmatprep.subr.mxu0 0.0
    %753 = vmatpush1.msra.mxu0 0.0
    %754 = vmatprep.subr.mxu0 0.0
    %755 = vmatpush1.msra.mxu0 0.0
    %756 = vmatprep.subr.mxu0 0.0
    %757 = vmatpush1.msra.mxu0 0.0
    %758 = vmatprep.subr.mxu0 0.0
    %759 = vmatpush1.msra.mxu0 0.0
    %760 = vmatprep.mubr.f32.mxu0 0.0
    %761 = vmatmul.mubr.f32.gmra.mrb[0].mxu0 %v620
    %v762 = vpop.f32.mrb[0].mxu0
    %v763 = vadd.f32 0.0, %v762
    %v764 = vpop.f32.mrb[0].mxu0
    %v765 = vadd.f32 0.0, %v764
    %766 = vdwg.mxu0
    %v767 = vadd.f32 %v621, %v692
    %v768 = vadd.f32 %v622, %v694
    %v769 = vadd.f32 %v623, %v763
    %v770 = vadd.f32 %v624, %v765
    %v771 = vxor.u32 %v767, 2147483648
    %v772 = vmul.f32 %v771, 1.442695
    %v773 = vpow.pop %v772
    %v774 = vadd.f32 %v773, 1.0
    %v775 = vrcp.pop %v774
    %v776 = vmul.f32 1.0, %v775
    %v777 = vxor.u32 %v768, 2147483648
    %v778 = vmul.f32 %v777, 1.442695
    %v779 = vpow.pop %v778
    %v780 = vadd.f32 %v779, 1.0
    %v781 = vrcp.pop %v780
    %v782 = vmul.f32 1.0, %v781
    %v783 = vtanh.pop %v769
    %v784 = vxor.u32 %v770, 2147483648
    %v785 = vmul.f32 %v784, 1.442695
    %v786 = vpow.pop %v785
    %v787 = vadd.f32 %v786, 1.0
    %v788 = vrcp.pop %v787
    %v789 = vmul.f32 1.0, %v788
    %v790 = vmul.f32 %v782, %v618
    %v791 = vmul.f32 %v776, %v783
    %v792 = vadd.f32 %v790, %v791
    %v793 = vtanh.pop %v792
    %v794 = vmul.f32 %v789, %v793
    %v795 = vld [vmem:[#allocation2 + $0x40] sm:$0xff]
    %v796 = vld [vmem:[#allocation2 + $0x48] sm:$0xff]
    %v797 = vld [vmem:[#allocation2 + $0x50] sm:$0xff]
    %v798 = vld [vmem:[#allocation2 + $0x58] sm:$0xff]
    %799 = vmatprep.subr.mxu0 %v388
    %800 = vmatpush1.msra.mxu0 %v387
    %801 = vmatprep.subr.mxu0 %v392
    %802 = vmatpush1.msra.mxu0 %v391
    %803 = vmatprep.subr.mxu0 %v396
    %804 = vmatpush1.msra.mxu0 %v395
    %805 = vmatprep.subr.mxu0 %v400
    %806 = vmatpush1.msra.mxu0 %v399
    %807 = vmatprep.subr.mxu0 %v404
    %808 = vmatpush1.msra.mxu0 %v403
    %809 = vmatprep.subr.mxu0 %v408
    %810 = vmatpush1.msra.mxu0 %v407
    %811 = vmatprep.subr.mxu0 %v412
    %812 = vmatpush1.msra.mxu0 %v411
    %813 = vmatprep.subr.mxu0 %v416
    %814 = vmatpush1.msra.mxu0 %v415
    %815 = vmatprep.subr.mxu0 %v420
    %816 = vmatpush1.msra.mxu0 %v419
    %817 = vmatprep.subr.mxu0 %v424
    %818 = vmatpush1.msra.mxu0 %v423
    %819 = vmatprep.subr.mxu0 %v428
    %820 = vmatpush1.msra.mxu0 %v427
    %821 = vmatprep.subr.mxu0 %v432
    %822 = vmatpush1.msra.mxu0 %v431
    %823 = vmatprep.subr.mxu0 %v436
    %824 = vmatpush1.msra.mxu0 %v435
    %825 = vmatprep.subr.mxu0 %v440
    %826 = vmatpush1.msra.mxu0 %v439
    %827 = vmatprep.subr.mxu0 %v444
    %828 = vmatpush1.msra.mxu0 %v443
    %829 = vmatprep.subr.mxu0 %v448
    %830 = vmatpush1.msra.mxu0 %v447
    %831 = vmatprep.subr.mxu0 0.0
    %832 = vmatpush1.msra.mxu0 0.0
    %833 = vmatprep.subr.mxu0 0.0
    %834 = vmatpush1.msra.mxu0 0.0
    %835 = vmatprep.subr.mxu0 0.0
    %836 = vmatpush1.msra.mxu0 0.0
    %837 = vmatprep.subr.mxu0 0.0
    %838 = vmatpush1.msra.mxu0 0.0
    %839 = vmatprep.subr.mxu0 0.0
    %840 = vmatpush1.msra.mxu0 0.0
    %841 = vmatprep.subr.mxu0 0.0
    %842 = vmatpush1.msra.mxu0 0.0
    %843 = vmatprep.subr.mxu0 0.0
    %844 = vmatpush1.msra.mxu0 0.0
    %845 = vmatprep.subr.mxu0 0.0
    %846 = vmatpush1.msra.mxu0 0.0
    %847 = vmatprep.subr.mxu0 0.0
    %848 = vmatpush1.msra.mxu0 0.0
    %849 = vmatprep.subr.mxu0 0.0
    %850 = vmatpush1.msra.mxu0 0.0
    %851 = vmatprep.subr.mxu0 0.0
    %852 = vmatpush1.msra.mxu0 0.0
    %853 = vmatprep.subr.mxu0 0.0
    %854 = vmatpush1.msra.mxu0 0.0
    %855 = vmatprep.subr.mxu0 0.0
    %856 = vmatpush1.msra.mxu0 0.0
    %857 = vmatprep.subr.mxu0 0.0
    %858 = vmatpush1.msra.mxu0 0.0
    %859 = vmatprep.subr.mxu0 0.0
    %860 = vmatpush1.msra.mxu0 0.0
    %861 = vmatprep.subr.mxu0 0.0
    %862 = vmatpush1.msra.mxu0 0.0
    %863 = vmatprep.mubr.f32.mxu0 0.0
    %864 = vmatmul.mubr.f32.gmra.mrb[0].mxu0 %v794
    %v865 = vpop.f32.mrb[0].mxu0
    %v866 = vadd.f32 0.0, %v865
    %v867 = vpop.f32.mrb[0].mxu0
    %v868 = vadd.f32 0.0, %v867
    %869 = vdwg.mxu0
    %870 = vmatprep.subr.mxu0 %v390
    %871 = vmatpush1.msra.mxu0 %v389
    %872 = vmatprep.subr.mxu0 %v394
    %873 = vmatpush1.msra.mxu0 %v393
    %874 = vmatprep.subr.mxu0 %v398
    %875 = vmatpush1.msra.mxu0 %v397
    %876 = vmatprep.subr.mxu0 %v402
    %877 = vmatpush1.msra.mxu0 %v401
    %878 = vmatprep.subr.mxu0 %v406
    %879 = vmatpush1.msra.mxu0 %v405
    %880 = vmatprep.subr.mxu0 %v410
    %881 = vmatpush1.msra.mxu0 %v409
    %882 = vmatprep.subr.mxu0 %v414
    %883 = vmatpush1.msra.mxu0 %v413
    %884 = vmatprep.subr.mxu0 %v418
    %885 = vmatpush1.msra.mxu0 %v417
    %886 = vmatprep.subr.mxu0 %v422
    %887 = vmatpush1.msra.mxu0 %v421
    %888 = vmatprep.subr.mxu0 %v426
    %889 = vmatpush1.msra.mxu0 %v425
    %890 = vmatprep.subr.mxu0 %v430
    %891 = vmatpush1.msra.mxu0 %v429
    %892 = vmatprep.subr.mxu0 %v434
    %893 = vmatpush1.msra.mxu0 %v433
    %894 = vmatprep.subr.mxu0 %v438
    %895 = vmatpush1.msra.mxu0 %v437
    %896 = vmatprep.subr.mxu0 %v442
    %897 = vmatpush1.msra.mxu0 %v441
    %898 = vmatprep.subr.mxu0 %v446
    %899 = vmatpush1.msra.mxu0 %v445
    %900 = vmatprep.subr.mxu0 %v450
    %901 = vmatpush1.msra.mxu0 %v449
    %902 = vmatprep.subr.mxu0 0.0
    %903 = vmatpush1.msra.mxu0 0.0
    %904 = vmatprep.subr.mxu0 0.0
    %905 = vmatpush1.msra.mxu0 0.0
    %906 = vmatprep.subr.mxu0 0.0
    %907 = vmatpush1.msra.mxu0 0.0
    %908 = vmatprep.subr.mxu0 0.0
    %909 = vmatpush1.msra.mxu0 0.0
    %910 = vmatprep.subr.mxu0 0.0
    %911 = vmatpush1.msra.mxu0 0.0
    %912 = vmatprep.subr.mxu0 0.0
    %913 = vmatpush1.msra.mxu0 0.0
    %914 = vmatprep.subr.mxu0 0.0
    %915 = vmatpush1.msra.mxu0 0.0
    %916 = vmatprep.subr.mxu0 0.0
    %917 = vmatpush1.msra.mxu0 0.0
    %918 = vmatprep.subr.mxu0 0.0
    %919 = vmatpush1.msra.mxu0 0.0
    %920 = vmatprep.subr.mxu0 0.0
    %921 = vmatpush1.msra.mxu0 0.0
    %922 = vmatprep.subr.mxu0 0.0
    %923 = vmatpush1.msra.mxu0 0.0
    %924 = vmatprep.subr.mxu0 0.0
    %925 = vmatpush1.msra.mxu0 0.0
    %926 = vmatprep.subr.mxu0 0.0
    %927 = vmatpush1.msra.mxu0 0.0
    %928 = vmatprep.subr.mxu0 0.0
    %929 = vmatpush1.msra.mxu0 0.0
    %930 = vmatprep.subr.mxu0 0.0
    %931 = vmatpush1.msra.mxu0 0.0
    %932 = vmatprep.subr.mxu0 0.0
    %933 = vmatpush1.msra.mxu0 0.0
    %934 = vmatprep.mubr.f32.mxu0 0.0
    %935 = vmatmul.mubr.f32.gmra.mrb[0].mxu0 %v794
    %v936 = vpop.f32.mrb[0].mxu0
    %v937 = vadd.f32 0.0, %v936
    %v938 = vpop.f32.mrb[0].mxu0
    %v939 = vadd.f32 0.0, %v938
    %940 = vdwg.mxu0
    %v941 = vadd.f32 %v795, %v866
    %v942 = vadd.f32 %v796, %v868
    %v943 = vadd.f32 %v797, %v937
    %v944 = vadd.f32 %v798, %v939
    %v945 = vxor.u32 %v941, 2147483648
    %v946 = vmul.f32 %v945, 1.442695
    %v947 = vpow.pop %v946
    %v948 = vadd.f32 %v947, 1.0
    %v949 = vrcp.pop %v948
    %v950 = vmul.f32 1.0, %v949
    %v951 = vxor.u32 %v942, 2147483648
    %v952 = vmul.f32 %v951, 1.442695
    %v953 = vpow.pop %v952
    %v954 = vadd.f32 %v953, 1.0
    %v955 = vrcp.pop %v954
    %v956 = vmul.f32 1.0, %v955
    %v957 = vtanh.pop %v943
    %v958 = vxor.u32 %v944, 2147483648
    %v959 = vmul.f32 %v958, 1.442695
    %v960 = vpow.pop %v959
    %v961 = vadd.f32 %v960, 1.0
    %v962 = vrcp.pop %v961
    %v963 = vmul.f32 1.0, %v962
    %v964 = vmul.f32 %v956, %v792
    %v965 = vmul.f32 %v950, %v957
    %v966 = vadd.f32 %v964, %v965
    %v967 = vtanh.pop %v966
    %v968 = vmul.f32 %v963, %v967
    %v969 = vld [vmem:[#allocation2 + $0x60] sm:$0xff]
    %v970 = vld [vmem:[#allocation2 + $0x68] sm:$0xff]
    %v971 = vld [vmem:[#allocation2 + $0x70] sm:$0xff]
    %v972 = vld [vmem:[#allocation2 + $0x78] sm:$0xff]
    %973 = vmatprep.subr.mxu0 %v388
    %974 = vmatpush1.msra.mxu0 %v387
    %975 = vmatprep.subr.mxu0 %v392
    %976 = vmatpush1.msra.mxu0 %v391
    %977 = vmatprep.subr.mxu0 %v396
    %978 = vmatpush1.msra.mxu0 %v395
    %979 = vmatprep.subr.mxu0 %v400
    %980 = vmatpush1.msra.mxu0 %v399
    %981 = vmatprep.subr.mxu0 %v404
    %982 = vmatpush1.msra.mxu0 %v403
    %983 = vmatprep.subr.mxu0 %v408
    %984 = vmatpush1.msra.mxu0 %v407
    %985 = vmatprep.subr.mxu0 %v412
    %986 = vmatpush1.msra.mxu0 %v411
    %987 = vmatprep.subr.mxu0 %v416
    %988 = vmatpush1.msra.mxu0 %v415
    %989 = vmatprep.subr.mxu0 %v420
    %990 = vmatpush1.msra.mxu0 %v419
    %991 = vmatprep.subr.mxu0 %v424
    %992 = vmatpush1.msra.mxu0 %v423
    %993 = vmatprep.subr.mxu0 %v428
    %994 = vmatpush1.msra.mxu0 %v427
    %995 = vmatprep.subr.mxu0 %v432
    %996 = vmatpush1.msra.mxu0 %v431
    %997 = vmatprep.subr.mxu0 %v436
    %998 = vmatpush1.msra.mxu0 %v435
    %999 = vmatprep.subr.mxu0 %v440
    %1000 = vmatpush1.msra.mxu0 %v439
    %1001 = vmatprep.subr.mxu0 %v444
    %1002 = vmatpush1.msra.mxu0 %v443
    %1003 = vmatprep.subr.mxu0 %v448
    %1004 = vmatpush1.msra.mxu0 %v447
    %1005 = vmatprep.subr.mxu0 0.0
    %1006 = vmatpush1.msra.mxu0 0.0
    %1007 = vmatprep.subr.mxu0 0.0
    %1008 = vmatpush1.msra.mxu0 0.0
    %1009 = vmatprep.subr.mxu0 0.0
    %1010 = vmatpush1.msra.mxu0 0.0
    %1011 = vmatprep.subr.mxu0 0.0
    %1012 = vmatpush1.msra.mxu0 0.0
    %1013 = vmatprep.subr.mxu0 0.0
    %1014 = vmatpush1.msra.mxu0 0.0
    %1015 = vmatprep.subr.mxu0 0.0
    %1016 = vmatpush1.msra.mxu0 0.0
    %1017 = vmatprep.subr.mxu0 0.0
    %1018 = vmatpush1.msra.mxu0 0.0
    %1019 = vmatprep.subr.mxu0 0.0
    %1020 = vmatpush1.msra.mxu0 0.0
    %1021 = vmatprep.subr.mxu0 0.0
    %1022 = vmatpush1.msra.mxu0 0.0
    %1023 = vmatprep.subr.mxu0 0.0
    %1024 = vmatpush1.msra.mxu0 0.0
    %1025 = vmatprep.subr.mxu0 0.0
    %1026 = vmatpush1.msra.mxu0 0.0
    %1027 = vmatprep.subr.mxu0 0.0
    %1028 = vmatpush1.msra.mxu0 0.0
    %1029 = vmatprep.subr.mxu0 0.0
    %1030 = vmatpush1.msra.mxu0 0.0
    %1031 = vmatprep.subr.mxu0 0.0
    %1032 = vmatpush1.msra.mxu0 0.0
    %1033 = vmatprep.subr.mxu0 0.0
    %1034 = vmatpush1.msra.mxu0 0.0
    %1035 = vmatprep.subr.mxu0 0.0
    %1036 = vmatpush1.msra.mxu0 0.0
    %1037 = vmatprep.mubr.f32.mxu0 0.0
    %1038 = vmatmul.mubr.f32.gmra.mrb[0].mxu0 %v968
    %v1039 = vpop.f32.mrb[0].mxu0
    %v1040 = vadd.f32 0.0, %v1039
    %v1041 = vpop.f32.mrb[0].mxu0
    %v1042 = vadd.f32 0.0, %v1041
    %1043 = vdwg.mxu0
    %1044 = vmatprep.subr.mxu0 %v390
    %1045 = vmatpush1.msra.mxu0 %v389
    %1046 = vmatprep.subr.mxu0 %v394
    %1047 = vmatpush1.msra.mxu0 %v393
    %1048 = vmatprep.subr.mxu0 %v398
    %1049 = vmatpush1.msra.mxu0 %v397
    %1050 = vmatprep.subr.mxu0 %v402
    %1051 = vmatpush1.msra.mxu0 %v401
    %1052 = vmatprep.subr.mxu0 %v406
    %1053 = vmatpush1.msra.mxu0 %v405
    %1054 = vmatprep.subr.mxu0 %v410
    %1055 = vmatpush1.msra.mxu0 %v409
    %1056 = vmatprep.subr.mxu0 %v414
    %1057 = vmatpush1.msra.mxu0 %v413
    %1058 = vmatprep.subr.mxu0 %v418
    %1059 = vmatpush1.msra.mxu0 %v417
    %1060 = vmatprep.subr.mxu0 %v422
    %1061 = vmatpush1.msra.mxu0 %v421
    %1062 = vmatprep.subr.mxu0 %v426
    %1063 = vmatpush1.msra.mxu0 %v425
    %1064 = vmatprep.subr.mxu0 %v430
    %1065 = vmatpush1.msra.mxu0 %v429
    %1066 = vmatprep.subr.mxu0 %v434
    %1067 = vmatpush1.msra.mxu0 %v433
    %1068 = vmatprep.subr.mxu0 %v438
    %1069 = vmatpush1.msra.mxu0 %v437
    %1070 = vmatprep.subr.mxu0 %v442
    %1071 = vmatpush1.msra.mxu0 %v441
    %1072 = vmatprep.subr.mxu0 %v446
    %1073 = vmatpush1.msra.mxu0 %v445
    %1074 = vmatprep.subr.mxu0 %v450
    %1075 = vmatpush1.msra.mxu0 %v449
    %1076 = vmatprep.subr.mxu0 0.0
    %1077 = vmatpush1.msra.mxu0 0.0
    %1078 = vmatprep.subr.mxu0 0.0
    %1079 = vmatpush1.msra.mxu0 0.0
    %1080 = vmatprep.subr.mxu0 0.0
    %1081 = vmatpush1.msra.mxu0 0.0
    %1082 = vmatprep.subr.mxu0 0.0
    %1083 = vmatpush1.msra.mxu0 0.0
    %1084 = vmatprep.subr.mxu0 0.0
    %1085 = vmatpush1.msra.mxu0 0.0
    %1086 = vmatprep.subr.mxu0 0.0
    %1087 = vmatpush1.msra.mxu0 0.0
    %1088 = vmatprep.subr.mxu0 0.0
    %1089 = vmatpush1.msra.mxu0 0.0
    %1090 = vmatprep.subr.mxu0 0.0
    %1091 = vmatpush1.msra.mxu0 0.0
    %1092 = vmatprep.subr.mxu0 0.0
    %1093 = vmatpush1.msra.mxu0 0.0
    %1094 = vmatprep.subr.mxu0 0.0
    %1095 = vmatpush1.msra.mxu0 0.0
    %1096 = vmatprep.subr.mxu0 0.0
    %1097 = vmatpush1.msra.mxu0 0.0
    %1098 = vmatprep.subr.mxu0 0.0
    %1099 = vmatpush1.msra.mxu0 0.0
    %1100 = vmatprep.subr.mxu0 0.0
    %1101 = vmatpush1.msra.mxu0 0.0
    %1102 = vmatprep.subr.mxu0 0.0
    %1103 = vmatpush1.msra.mxu0 0.0
    %1104 = vmatprep.subr.mxu0 0.0
    %1105 = vmatpush1.msra.mxu0 0.0
    %1106 = vmatprep.subr.mxu0 0.0
    %1107 = vmatpush1.msra.mxu0 0.0
    %1108 = vmatprep.mubr.f32.mxu0 0.0
    %1109 = vmatmul.mubr.f32.gmra.mrb[0].mxu0 %v968
    %v1110 = vpop.f32.mrb[0].mxu0
    %v1111 = vadd.f32 0.0, %v1110
    %v1112 = vpop.f32.mrb[0].mxu0
    %v1113 = vadd.f32 0.0, %v1112
    %1114 = vdwg.mxu0
    %v1115 = vadd.f32 %v969, %v1040
    %v1116 = vadd.f32 %v970, %v1042
    %v1117 = vadd.f32 %v971, %v1111
    %v1118 = vadd.f32 %v972, %v1113
    %v1119 = vxor.u32 %v1115, 2147483648
    %v1120 = vmul.f32 %v1119, 1.442695
    %v1121 = vpow.pop %v1120
    %v1122 = vadd.f32 %v1121, 1.0
    %v1123 = vrcp.pop %v1122
    %v1124 = vmul.f32 1.0, %v1123
    %v1125 = vxor.u32 %v1116, 2147483648
    %v1126 = vmul.f32 %v1125, 1.442695
    %v1127 = vpow.pop %v1126
    %v1128 = vadd.f32 %v1127, 1.0
    %v1129 = vrcp.pop %v1128
    %v1130 = vmul.f32 1.0, %v1129
    %v1131 = vtanh.pop %v1117
    %v1132 = vxor.u32 %v1118, 2147483648
    %v1133 = vmul.f32 %v1132, 1.442695
    %v1134 = vpow.pop %v1133
    %v1135 = vadd.f32 %v1134, 1.0
    %v1136 = vrcp.pop %v1135
    %v1137 = vmul.f32 1.0, %v1136
    %v1138 = vmul.f32 %v1130, %v966
    %v1139 = vmul.f32 %v1124, %v1131
    %v1140 = vadd.f32 %v1138, %v1139
    %v1141 = vtanh.pop %v1140
    %v1142 = vmul.f32 %v1137, %v1141
    %v1143 = vld [vmem:[#allocation2 + $0x80] sm:$0xff]
    %v1144 = vld [vmem:[#allocation2 + $0x88] sm:$0xff]
    %v1145 = vld [vmem:[#allocation2 + $0x90] sm:$0xff]
    %v1146 = vld [vmem:[#allocation2 + $0x98] sm:$0xff]
    %1147 = vmatprep.subr.mxu0 %v388
    %1148 = vmatpush1.msra.mxu0 %v387
    %1149 = vmatprep.subr.mxu0 %v392
    %1150 = vmatpush1.msra.mxu0 %v391
    %1151 = vmatprep.subr.mxu0 %v396
    %1152 = vmatpush1.msra.mxu0 %v395
    %1153 = vmatprep.subr.mxu0 %v400
    %1154 = vmatpush1.msra.mxu0 %v399
    %1155 = vmatprep.subr.mxu0 %v404
    %1156 = vmatpush1.msra.mxu0 %v403
    %1157 = vmatprep.subr.mxu0 %v408
    %1158 = vmatpush1.msra.mxu0 %v407
    %1159 = vmatprep.subr.mxu0 %v412
    %1160 = vmatpush1.msra.mxu0 %v411
    %1161 = vmatprep.subr.mxu0 %v416
    %1162 = vmatpush1.msra.mxu0 %v415
    %1163 = vmatprep.subr.mxu0 %v420
    %1164 = vmatpush1.msra.mxu0 %v419
    %1165 = vmatprep.subr.mxu0 %v424
    %1166 = vmatpush1.msra.mxu0 %v423
    %1167 = vmatprep.subr.mxu0 %v428
    %1168 = vmatpush1.msra.mxu0 %v427
    %1169 = vmatprep.subr.mxu0 %v432
    %1170 = vmatpush1.msra.mxu0 %v431
    %1171 = vmatprep.subr.mxu0 %v436
    %1172 = vmatpush1.msra.mxu0 %v435
    %1173 = vmatprep.subr.mxu0 %v440
    %1174 = vmatpush1.msra.mxu0 %v439
    %1175 = vmatprep.subr.mxu0 %v444
    %1176 = vmatpush1.msra.mxu0 %v443
    %1177 = vmatprep.subr.mxu0 %v448
    %1178 = vmatpush1.msra.mxu0 %v447
    %1179 = vmatprep.subr.mxu0 0.0
    %1180 = vmatpush1.msra.mxu0 0.0
    %1181 = vmatprep.subr.mxu0 0.0
    %1182 = vmatpush1.msra.mxu0 0.0
    %1183 = vmatprep.subr.mxu0 0.0
    %1184 = vmatpush1.msra.mxu0 0.0
    %1185 = vmatprep.subr.mxu0 0.0
    %1186 = vmatpush1.msra.mxu0 0.0
    %1187 = vmatprep.subr.mxu0 0.0
    %1188 = vmatpush1.msra.mxu0 0.0
    %1189 = vmatprep.subr.mxu0 0.0
    %1190 = vmatpush1.msra.mxu0 0.0
    %1191 = vmatprep.subr.mxu0 0.0
    %1192 = vmatpush1.msra.mxu0 0.0
    %1193 = vmatprep.subr.mxu0 0.0
    %1194 = vmatpush1.msra.mxu0 0.0
    %1195 = vmatprep.subr.mxu0 0.0
    %1196 = vmatpush1.msra.mxu0 0.0
    %1197 = vmatprep.subr.mxu0 0.0
    %1198 = vmatpush1.msra.mxu0 0.0
    %1199 = vmatprep.subr.mxu0 0.0
    %1200 = vmatpush1.msra.mxu0 0.0
    %1201 = vmatprep.subr.mxu0 0.0
    %1202 = vmatpush1.msra.mxu0 0.0
    %1203 = vmatprep.subr.mxu0 0.0
    %1204 = vmatpush1.msra.mxu0 0.0
    %1205 = vmatprep.subr.mxu0 0.0
    %1206 = vmatpush1.msra.mxu0 0.0
    %1207 = vmatprep.subr.mxu0 0.0
    %1208 = vmatpush1.msra.mxu0 0.0
    %1209 = vmatprep.subr.mxu0 0.0
    %1210 = vmatpush1.msra.mxu0 0.0
    %1211 = vmatprep.mubr.f32.mxu0 0.0
    %1212 = vmatmul.mubr.f32.gmra.mrb[0].mxu0 %v1142
    %v1213 = vpop.f32.mrb[0].mxu0
    %v1214 = vadd.f32 0.0, %v1213
    %v1215 = vpop.f32.mrb[0].mxu0
    %v1216 = vadd.f32 0.0, %v1215
    %1217 = vdwg.mxu0
    %1218 = vmatprep.subr.mxu0 %v390
    %1219 = vmatpush1.msra.mxu0 %v389
    %1220 = vmatprep.subr.mxu0 %v394
    %1221 = vmatpush1.msra.mxu0 %v393
    %1222 = vmatprep.subr.mxu0 %v398
    %1223 = vmatpush1.msra.mxu0 %v397
    %1224 = vmatprep.subr.mxu0 %v402
    %1225 = vmatpush1.msra.mxu0 %v401
    %1226 = vmatprep.subr.mxu0 %v406
    %1227 = vmatpush1.msra.mxu0 %v405
    %1228 = vmatprep.subr.mxu0 %v410
    %1229 = vmatpush1.msra.mxu0 %v409
    %1230 = vmatprep.subr.mxu0 %v414
    %1231 = vmatpush1.msra.mxu0 %v413
    %1232 = vmatprep.subr.mxu0 %v418
    %1233 = vmatpush1.msra.mxu0 %v417
    %1234 = vmatprep.subr.mxu0 %v422
    %1235 = vmatpush1.msra.mxu0 %v421
    %1236 = vmatprep.subr.mxu0 %v426
    %1237 = vmatpush1.msra.mxu0 %v425
    %1238 = vmatprep.subr.mxu0 %v430
    %1239 = vmatpush1.msra.mxu0 %v429
    %1240 = vmatprep.subr.mxu0 %v434
    %1241 = vmatpush1.msra.mxu0 %v433
    %1242 = vmatprep.subr.mxu0 %v438
    %1243 = vmatpush1.msra.mxu0 %v437
    %1244 = vmatprep.subr.mxu0 %v442
    %1245 = vmatpush1.msra.mxu0 %v441
    %1246 = vmatprep.subr.mxu0 %v446
    %1247 = vmatpush1.msra.mxu0 %v445
    %1248 = vmatprep.subr.mxu0 %v450
    %1249 = vmatpush1.msra.mxu0 %v449
    %1250 = vmatprep.subr.mxu0 0.0
    %1251 = vmatpush1.msra.mxu0 0.0
    %1252 = vmatprep.subr.mxu0 0.0
    %1253 = vmatpush1.msra.mxu0 0.0
    %1254 = vmatprep.subr.mxu0 0.0
    %1255 = vmatpush1.msra.mxu0 0.0
    %1256 = vmatprep.subr.mxu0 0.0
    %1257 = vmatpush1.msra.mxu0 0.0
    %1258 = vmatprep.subr.mxu0 0.0
    %1259 = vmatpush1.msra.mxu0 0.0
    %1260 = vmatprep.subr.mxu0 0.0
    %1261 = vmatpush1.msra.mxu0 0.0
    %1262 = vmatprep.subr.mxu0 0.0
    %1263 = vmatpush1.msra.mxu0 0.0
    %1264 = vmatprep.subr.mxu0 0.0
    %1265 = vmatpush1.msra.mxu0 0.0
    %1266 = vmatprep.subr.mxu0 0.0
    %1267 = vmatpush1.msra.mxu0 0.0
    %1268 = vmatprep.subr.mxu0 0.0
    %1269 = vmatpush1.msra.mxu0 0.0
    %1270 = vmatprep.subr.mxu0 0.0
    %1271 = vmatpush1.msra.mxu0 0.0
    %1272 = vmatprep.subr.mxu0 0.0
    %1273 = vmatpush1.msra.mxu0 0.0
    %1274 = vmatprep.subr.mxu0 0.0
    %1275 = vmatpush1.msra.mxu0 0.0
    %1276 = vmatprep.subr.mxu0 0.0
    %1277 = vmatpush1.msra.mxu0 0.0
    %1278 = vmatprep.subr.mxu0 0.0
    %1279 = vmatpush1.msra.mxu0 0.0
    %1280 = vmatprep.subr.mxu0 0.0
    %1281 = vmatpush1.msra.mxu0 0.0
    %1282 = vmatprep.mubr.f32.mxu0 0.0
    %1283 = vmatmul.mubr.f32.gmra.mrb[0].mxu0 %v1142
    %v1284 = vpop.f32.mrb[0].mxu0
    %v1285 = vadd.f32 0.0, %v1284
    %v1286 = vpop.f32.mrb[0].mxu0
    %v1287 = vadd.f32 0.0, %v1286
    %1288 = vdwg.mxu0
    %v1289 = vadd.f32 %v1143, %v1214
    %v1290 = vadd.f32 %v1144, %v1216
    %v1291 = vadd.f32 %v1145, %v1285
    %v1292 = vadd.f32 %v1146, %v1287
    %v1293 = vxor.u32 %v1289, 2147483648
    %v1294 = vmul.f32 %v1293, 1.442695
    %v1295 = vpow.pop %v1294
    %v1296 = vadd.f32 %v1295, 1.0
    %v1297 = vrcp.pop %v1296
    %v1298 = vmul.f32 1.0, %v1297
    %v1299 = vxor.u32 %v1290, 2147483648
    %v1300 = vmul.f32 %v1299, 1.442695
    %v1301 = vpow.pop %v1300
    %v1302 = vadd.f32 %v1301, 1.0
    %v1303 = vrcp.pop %v1302
    %v1304 = vmul.f32 1.0, %v1303
    %v1305 = vtanh.pop %v1291
    %v1306 = vxor.u32 %v1292, 2147483648
    %v1307 = vmul.f32 %v1306, 1.442695
    %v1308 = vpow.pop %v1307
    %v1309 = vadd.f32 %v1308, 1.0
    %v1310 = vrcp.pop %v1309
    %v1311 = vmul.f32 1.0, %v1310
    %v1312 = vmul.f32 %v1304, %v1140
    %v1313 = vmul.f32 %v1298, %v1305
    %v1314 = vadd.f32 %v1312, %v1313
    %v1315 = vtanh.pop %v1314
    %v1316 = vmul.f32 %v1311, %v1315
    %v1317 = vld [vmem:[#allocation2 + $0xa0] sm:$0xff]
    %v1318 = vld [vmem:[#allocation2 + $0xa8] sm:$0xff]
    %v1319 = vld [vmem:[#allocation2 + $0xb0] sm:$0xff]
    %v1320 = vld [vmem:[#allocation2 + $0xb8] sm:$0xff]
    %1321 = vmatprep.subr.mxu0 %v388
    %1322 = vmatpush1.msra.mxu0 %v387
    %1323 = vmatprep.subr.mxu0 %v392
    %1324 = vmatpush1.msra.mxu0 %v391
    %1325 = vmatprep.subr.mxu0 %v396
    %1326 = vmatpush1.msra.mxu0 %v395
    %1327 = vmatprep.subr.mxu0 %v400
    %1328 = vmatpush1.msra.mxu0 %v399
    %1329 = vmatprep.subr.mxu0 %v404
    %1330 = vmatpush1.msra.mxu0 %v403
    %1331 = vmatprep.subr.mxu0 %v408
    %1332 = vmatpush1.msra.mxu0 %v407
    %1333 = vmatprep.subr.mxu0 %v412
    %1334 = vmatpush1.msra.mxu0 %v411
    %1335 = vmatprep.subr.mxu0 %v416
    %1336 = vmatpush1.msra.mxu0 %v415
    %1337 = vmatprep.subr.mxu0 %v420
    %1338 = vmatpush1.msra.mxu0 %v419
    %1339 = vmatprep.subr.mxu0 %v424
    %1340 = vmatpush1.msra.mxu0 %v423
    %1341 = vmatprep.subr.mxu0 %v428
    %1342 = vmatpush1.msra.mxu0 %v427
    %1343 = vmatprep.subr.mxu0 %v432
    %1344 = vmatpush1.msra.mxu0 %v431
    %1345 = vmatprep.subr.mxu0 %v436
    %1346 = vmatpush1.msra.mxu0 %v435
    %1347 = vmatprep.subr.mxu0 %v440
    %1348 = vmatpush1.msra.mxu0 %v439
    %1349 = vmatprep.subr.mxu0 %v444
    %1350 = vmatpush1.msra.mxu0 %v443
    %1351 = vmatprep.subr.mxu0 %v448
    %1352 = vmatpush1.msra.mxu0 %v447
    %1353 = vmatprep.subr.mxu0 0.0
    %1354 = vmatpush1.msra.mxu0 0.0
    %1355 = vmatprep.subr.mxu0 0.0
    %1356 = vmatpush1.msra.mxu0 0.0
    %1357 = vmatprep.subr.mxu0 0.0
    %1358 = vmatpush1.msra.mxu0 0.0
    %1359 = vmatprep.subr.mxu0 0.0
    %1360 = vmatpush1.msra.mxu0 0.0
    %1361 = vmatprep.subr.mxu0 0.0
    %1362 = vmatpush1.msra.mxu0 0.0
    %1363 = vmatprep.subr.mxu0 0.0
    %1364 = vmatpush1.msra.mxu0 0.0
    %1365 = vmatprep.subr.mxu0 0.0
    %1366 = vmatpush1.msra.mxu0 0.0
    %1367 = vmatprep.subr.mxu0 0.0
    %1368 = vmatpush1.msra.mxu0 0.0
    %1369 = vmatprep.subr.mxu0 0.0
    %1370 = vmatpush1.msra.mxu0 0.0
    %1371 = vmatprep.subr.mxu0 0.0
    %1372 = vmatpush1.msra.mxu0 0.0
    %1373 = vmatprep.subr.mxu0 0.0
    %1374 = vmatpush1.msra.mxu0 0.0
    %1375 = vmatprep.subr.mxu0 0.0
    %1376 = vmatpush1.msra.mxu0 0.0
    %1377 = vmatprep.subr.mxu0 0.0
    %1378 = vmatpush1.msra.mxu0 0.0
    %1379 = vmatprep.subr.mxu0 0.0
    %1380 = vmatpush1.msra.mxu0 0.0
    %1381 = vmatprep.subr.mxu0 0.0
    %1382 = vmatpush1.msra.mxu0 0.0
    %1383 = vmatprep.subr.mxu0 0.0
    %1384 = vmatpush1.msra.mxu0 0.0
    %1385 = vmatprep.mubr.f32.mxu0 0.0
    %1386 = vmatmul.mubr.f32.gmra.mrb[0].mxu0 %v1316
    %v1387 = vpop.f32.mrb[0].mxu0
    %v1388 = vadd.f32 0.0, %v1387
    %v1389 = vpop.f32.mrb[0].mxu0
    %v1390 = vadd.f32 0.0, %v1389
    %1391 = vdwg.mxu0
    %1392 = vmatprep.subr.mxu0 %v390
    %1393 = vmatpush1.msra.mxu0 %v389
    %1394 = vmatprep.subr.mxu0 %v394
    %1395 = vmatpush1.msra.mxu0 %v393
    %1396 = vmatprep.subr.mxu0 %v398
    %1397 = vmatpush1.msra.mxu0 %v397
    %1398 = vmatprep.subr.mxu0 %v402
    %1399 = vmatpush1.msra.mxu0 %v401
    %1400 = vmatprep.subr.mxu0 %v406
    %1401 = vmatpush1.msra.mxu0 %v405
    %1402 = vmatprep.subr.mxu0 %v410
    %1403 = vmatpush1.msra.mxu0 %v409
    %1404 = vmatprep.subr.mxu0 %v414
    %1405 = vmatpush1.msra.mxu0 %v413
    %1406 = vmatprep.subr.mxu0 %v418
    %1407 = vmatpush1.msra.mxu0 %v417
    %1408 = vmatprep.subr.mxu0 %v422
    %1409 = vmatpush1.msra.mxu0 %v421
    %1410 = vmatprep.subr.mxu0 %v426
    %1411 = vmatpush1.msra.mxu0 %v425
    %1412 = vmatprep.subr.mxu0 %v430
    %1413 = vmatpush1.msra.mxu0 %v429
    %1414 = vmatprep.subr.mxu0 %v434
    %1415 = vmatpush1.msra.mxu0 %v433
    %1416 = vmatprep.subr.mxu0 %v438
    %1417 = vmatpush1.msra.mxu0 %v437
    %1418 = vmatprep.subr.mxu0 %v442
    %1419 = vmatpush1.msra.mxu0 %v441
    %1420 = vmatprep.subr.mxu0 %v446
    %1421 = vmatpush1.msra.mxu0 %v445
    %1422 = vmatprep.subr.mxu0 %v450
    %1423 = vmatpush1.msra.mxu0 %v449
    %1424 = vmatprep.subr.mxu0 0.0
    %1425 = vmatpush1.msra.mxu0 0.0
    %1426 = vmatprep.subr.mxu0 0.0
    %1427 = vmatpush1.msra.mxu0 0.0
    %1428 = vmatprep.subr.mxu0 0.0
    %1429 = vmatpush1.msra.mxu0 0.0
    %1430 = vmatprep.subr.mxu0 0.0
    %1431 = vmatpush1.msra.mxu0 0.0
    %1432 = vmatprep.subr.mxu0 0.0
    %1433 = vmatpush1.msra.mxu0 0.0
    %1434 = vmatprep.subr.mxu0 0.0
    %1435 = vmatpush1.msra.mxu0 0.0
    %1436 = vmatprep.subr.mxu0 0.0
    %1437 = vmatpush1.msra.mxu0 0.0
    %1438 = vmatprep.subr.mxu0 0.0
    %1439 = vmatpush1.msra.mxu0 0.0
    %1440 = vmatprep.subr.mxu0 0.0
    %1441 = vmatpush1.msra.mxu0 0.0
    %1442 = vmatprep.subr.mxu0 0.0
    %1443 = vmatpush1.msra.mxu0 0.0
    %1444 = vmatprep.subr.mxu0 0.0
    %1445 = vmatpush1.msra.mxu0 0.0
    %1446 = vmatprep.subr.mxu0 0.0
    %1447 = vmatpush1.msra.mxu0 0.0
    %1448 = vmatprep.subr.mxu0 0.0
    %1449 = vmatpush1.msra.mxu0 0.0
    %1450 = vmatprep.subr.mxu0 0.0
    %1451 = vmatpush1.msra.mxu0 0.0
    %1452 = vmatprep.subr.mxu0 0.0
    %1453 = vmatpush1.msra.mxu0 0.0
    %1454 = vmatprep.subr.mxu0 0.0
    %1455 = vmatpush1.msra.mxu0 0.0
    %1456 = vmatprep.mubr.f32.mxu0 0.0
    %1457 = vmatmul.mubr.f32.gmra.mrb[0].mxu0 %v1316
    %v1458 = vpop.f32.mrb[0].mxu0
    %v1459 = vadd.f32 0.0, %v1458
    %v1460 = vpop.f32.mrb[0].mxu0
    %v1461 = vadd.f32 0.0, %v1460
    %1462 = vdwg.mxu0
    %v1463 = vadd.f32 %v1317, %v1388
    %v1464 = vadd.f32 %v1318, %v1390
    %v1465 = vadd.f32 %v1319, %v1459
    %v1466 = vadd.f32 %v1320, %v1461
    %v1467 = vxor.u32 %v1463, 2147483648
    %v1468 = vmul.f32 %v1467, 1.442695
    %v1469 = vpow.pop %v1468
    %v1470 = vadd.f32 %v1469, 1.0
    %v1471 = vrcp.pop %v1470
    %v1472 = vmul.f32 1.0, %v1471
    %v1473 = vxor.u32 %v1464, 2147483648
    %v1474 = vmul.f32 %v1473, 1.442695
    %v1475 = vpow.pop %v1474
    %v1476 = vadd.f32 %v1475, 1.0
    %v1477 = vrcp.pop %v1476
    %v1478 = vmul.f32 1.0, %v1477
    %v1479 = vtanh.pop %v1465
    %v1480 = vxor.u32 %v1466, 2147483648
    %v1481 = vmul.f32 %v1480, 1.442695
    %v1482 = vpow.pop %v1481
    %v1483 = vadd.f32 %v1482, 1.0
    %v1484 = vrcp.pop %v1483
    %v1485 = vmul.f32 1.0, %v1484
    %v1486 = vmul.f32 %v1478, %v1314
    %v1487 = vmul.f32 %v1472, %v1479
    %v1488 = vadd.f32 %v1486, %v1487
    %v1489 = vtanh.pop %v1488
    %v1490 = vmul.f32 %v1485, %v1489
    %v1491 = vld [vmem:[#allocation2 + $0xc0] sm:$0xff]
    %v1492 = vld [vmem:[#allocation2 + $0xc8] sm:$0xff]
    %v1493 = vld [vmem:[#allocation2 + $0xd0] sm:$0xff]
    %v1494 = vld [vmem:[#allocation2 + $0xd8] sm:$0xff]
    %1495 = vmatprep.subr.mxu0 %v388
    %1496 = vmatpush1.msra.mxu0 %v387
    %1497 = vmatprep.subr.mxu0 %v392
    %1498 = vmatpush1.msra.mxu0 %v391
    %1499 = vmatprep.subr.mxu0 %v396
    %1500 = vmatpush1.msra.mxu0 %v395
    %1501 = vmatprep.subr.mxu0 %v400
    %1502 = vmatpush1.msra.mxu0 %v399
    %1503 = vmatprep.subr.mxu0 %v404
    %1504 = vmatpush1.msra.mxu0 %v403
    %1505 = vmatprep.subr.mxu0 %v408
    %1506 = vmatpush1.msra.mxu0 %v407
    %1507 = vmatprep.subr.mxu0 %v412
    %1508 = vmatpush1.msra.mxu0 %v411
    %1509 = vmatprep.subr.mxu0 %v416
    %1510 = vmatpush1.msra.mxu0 %v415
    %1511 = vmatprep.subr.mxu0 %v420
    %1512 = vmatpush1.msra.mxu0 %v419
    %1513 = vmatprep.subr.mxu0 %v424
    %1514 = vmatpush1.msra.mxu0 %v423
    %1515 = vmatprep.subr.mxu0 %v428
    %1516 = vmatpush1.msra.mxu0 %v427
    %1517 = vmatprep.subr.mxu0 %v432
    %1518 = vmatpush1.msra.mxu0 %v431
    %1519 = vmatprep.subr.mxu0 %v436
    %1520 = vmatpush1.msra.mxu0 %v435
    %1521 = vmatprep.subr.mxu0 %v440
    %1522 = vmatpush1.msra.mxu0 %v439
    %1523 = vmatprep.subr.mxu0 %v444
    %1524 = vmatpush1.msra.mxu0 %v443
    %1525 = vmatprep.subr.mxu0 %v448
    %1526 = vmatpush1.msra.mxu0 %v447
    %1527 = vmatprep.subr.mxu0 0.0
    %1528 = vmatpush1.msra.mxu0 0.0
    %1529 = vmatprep.subr.mxu0 0.0
    %1530 = vmatpush1.msra.mxu0 0.0
    %1531 = vmatprep.subr.mxu0 0.0
    %1532 = vmatpush1.msra.mxu0 0.0
    %1533 = vmatprep.subr.mxu0 0.0
    %1534 = vmatpush1.msra.mxu0 0.0
    %1535 = vmatprep.subr.mxu0 0.0
    %1536 = vmatpush1.msra.mxu0 0.0
    %1537 = vmatprep.subr.mxu0 0.0
    %1538 = vmatpush1.msra.mxu0 0.0
    %1539 = vmatprep.subr.mxu0 0.0
    %1540 = vmatpush1.msra.mxu0 0.0
    %1541 = vmatprep.subr.mxu0 0.0
    %1542 = vmatpush1.msra.mxu0 0.0
    %1543 = vmatprep.subr.mxu0 0.0
    %1544 = vmatpush1.msra.mxu0 0.0
    %1545 = vmatprep.subr.mxu0 0.0
    %1546 = vmatpush1.msra.mxu0 0.0
    %1547 = vmatprep.subr.mxu0 0.0
    %1548 = vmatpush1.msra.mxu0 0.0
    %1549 = vmatprep.subr.mxu0 0.0
    %1550 = vmatpush1.msra.mxu0 0.0
    %1551 = vmatprep.subr.mxu0 0.0
    %1552 = vmatpush1.msra.mxu0 0.0
    %1553 = vmatprep.subr.mxu0 0.0
    %1554 = vmatpush1.msra.mxu0 0.0
    %1555 = vmatprep.subr.mxu0 0.0
    %1556 = vmatpush1.msra.mxu0 0.0
    %1557 = vmatprep.subr.mxu0 0.0
    %1558 = vmatpush1.msra.mxu0 0.0
    %1559 = vmatprep.mubr.f32.mxu0 0.0
    %1560 = vmatmul.mubr.f32.gmra.mrb[0].mxu0 %v1490
    %v1561 = vpop.f32.mrb[0].mxu0
    %v1562 = vadd.f32 0.0, %v1561
    %v1563 = vpop.f32.mrb[0].mxu0
    %v1564 = vadd.f32 0.0, %v1563
    %1565 = vdwg.mxu0
    %1566 = vmatprep.subr.mxu0 %v390
    %1567 = vmatpush1.msra.mxu0 %v389
    %1568 = vmatprep.subr.mxu0 %v394
    %1569 = vmatpush1.msra.mxu0 %v393
    %1570 = vmatprep.subr.mxu0 %v398
    %1571 = vmatpush1.msra.mxu0 %v397
    %1572 = vmatprep.subr.mxu0 %v402
    %1573 = vmatpush1.msra.mxu0 %v401
    %1574 = vmatprep.subr.mxu0 %v406
    %1575 = vmatpush1.msra.mxu0 %v405
    %1576 = vmatprep.subr.mxu0 %v410
    %1577 = vmatpush1.msra.mxu0 %v409
    %1578 = vmatprep.subr.mxu0 %v414
    %1579 = vmatpush1.msra.mxu0 %v413
    %1580 = vmatprep.subr.mxu0 %v418
    %1581 = vmatpush1.msra.mxu0 %v417
    %1582 = vmatprep.subr.mxu0 %v422
    %1583 = vmatpush1.msra.mxu0 %v421
    %1584 = vmatprep.subr.mxu0 %v426
    %1585 = vmatpush1.msra.mxu0 %v425
    %1586 = vmatprep.subr.mxu0 %v430
    %1587 = vmatpush1.msra.mxu0 %v429
    %1588 = vmatprep.subr.mxu0 %v434
    %1589 = vmatpush1.msra.mxu0 %v433
    %1590 = vmatprep.subr.mxu0 %v438
    %1591 = vmatpush1.msra.mxu0 %v437
    %1592 = vmatprep.subr.mxu0 %v442
    %1593 = vmatpush1.msra.mxu0 %v441
    %1594 = vmatprep.subr.mxu0 %v446
    %1595 = vmatpush1.msra.mxu0 %v445
    %1596 = vmatprep.subr.mxu0 %v450
    %1597 = vmatpush1.msra.mxu0 %v449
    %1598 = vmatprep.subr.mxu0 0.0
    %1599 = vmatpush1.msra.mxu0 0.0
    %1600 = vmatprep.subr.mxu0 0.0
    %1601 = vmatpush1.msra.mxu0 0.0
    %1602 = vmatprep.subr.mxu0 0.0
    %1603 = vmatpush1.msra.mxu0 0.0
    %1604 = vmatprep.subr.mxu0 0.0
    %1605 = vmatpush1.msra.mxu0 0.0
    %1606 = vmatprep.subr.mxu0 0.0
    %1607 = vmatpush1.msra.mxu0 0.0
    %1608 = vmatprep.subr.mxu0 0.0
    %1609 = vmatpush1.msra.mxu0 0.0
    %1610 = vmatprep.subr.mxu0 0.0
    %1611 = vmatpush1.msra.mxu0 0.0
    %1612 = vmatprep.subr.mxu0 0.0
    %1613 = vmatpush1.msra.mxu0 0.0
    %1614 = vmatprep.subr.mxu0 0.0
    %1615 = vmatpush1.msra.mxu0 0.0
    %1616 = vmatprep.subr.mxu0 0.0
    %1617 = vmatpush1.msra.mxu0 0.0
    %1618 = vmatprep.subr.mxu0 0.0
    %1619 = vmatpush1.msra.mxu0 0.0
    %1620 = vmatprep.subr.mxu0 0.0
    %1621 = vmatpush1.msra.mxu0 0.0
    %1622 = vmatprep.subr.mxu0 0.0
    %1623 = vmatpush1.msra.mxu0 0.0
    %1624 = vmatprep.subr.mxu0 0.0
    %1625 = vmatpush1.msra.mxu0 0.0
    %1626 = vmatprep.subr.mxu0 0.0
    %1627 = vmatpush1.msra.mxu0 0.0
    %1628 = vmatprep.subr.mxu0 0.0
    %1629 = vmatpush1.msra.mxu0 0.0
    %1630 = vmatprep.mubr.f32.mxu0 0.0
    %1631 = vmatmul.mubr.f32.gmra.mrb[0].mxu0 %v1490
    %v1632 = vpop.f32.mrb[0].mxu0
    %v1633 = vadd.f32 0.0, %v1632
    %v1634 = vpop.f32.mrb[0].mxu0
    %v1635 = vadd.f32 0.0, %v1634
    %1636 = vdwg.mxu0
    %v1637 = vadd.f32 %v1491, %v1562
    %v1638 = vadd.f32 %v1492, %v1564
    %v1639 = vadd.f32 %v1493, %v1633
    %v1640 = vadd.f32 %v1494, %v1635
    %v1641 = vxor.u32 %v1637, 2147483648
    %v1642 = vmul.f32 %v1641, 1.442695
    %v1643 = vpow.pop %v1642
    %v1644 = vadd.f32 %v1643, 1.0
    %v1645 = vrcp.pop %v1644
    %v1646 = vmul.f32 1.0, %v1645
    %v1647 = vxor.u32 %v1638, 2147483648
    %v1648 = vmul.f32 %v1647, 1.442695
    %v1649 = vpow.pop %v1648
    %v1650 = vadd.f32 %v1649, 1.0
    %v1651 = vrcp.pop %v1650
    %v1652 = vmul.f32 1.0, %v1651
    %v1653 = vtanh.pop %v1639
    %v1654 = vxor.u32 %v1640, 2147483648
    %v1655 = vmul.f32 %v1654, 1.442695
    %v1656 = vpow.pop %v1655
    %v1657 = vadd.f32 %v1656, 1.0
    %v1658 = vrcp.pop %v1657
    %v1659 = vmul.f32 1.0, %v1658
    %v1660 = vmul.f32 %v1652, %v1488
    %v1661 = vmul.f32 %v1646, %v1653
    %v1662 = vadd.f32 %v1660, %v1661
    %v1663 = vtanh.pop %v1662
    %v1664 = vmul.f32 %v1659, %v1663
    %v1665 = vld [vmem:[#allocation2 + $0xe0] sm:$0xff]
    %v1666 = vld [vmem:[#allocation2 + $0xe8] sm:$0xff]
    %v1667 = vld [vmem:[#allocation2 + $0xf0] sm:$0xff]
    %v1668 = vld [vmem:[#allocation2 + $0xf8] sm:$0xff]
    %1669 = vmatprep.subr.mxu0 %v388
    %1670 = vmatpush1.msra.mxu0 %v387
    %1671 = vmatprep.subr.mxu0 %v392
    %1672 = vmatpush1.msra.mxu0 %v391
    %1673 = vmatprep.subr.mxu0 %v396
    %1674 = vmatpush1.msra.mxu0 %v395
    %1675 = vmatprep.subr.mxu0 %v400
    %1676 = vmatpush1.msra.mxu0 %v399
    %1677 = vmatprep.subr.mxu0 %v404
    %1678 = vmatpush1.msra.mxu0 %v403
    %1679 = vmatprep.subr.mxu0 %v408
    %1680 = vmatpush1.msra.mxu0 %v407
    %1681 = vmatprep.subr.mxu0 %v412
    %1682 = vmatpush1.msra.mxu0 %v411
    %1683 = vmatprep.subr.mxu0 %v416
    %1684 = vmatpush1.msra.mxu0 %v415
    %1685 = vmatprep.subr.mxu0 %v420
    %1686 = vmatpush1.msra.mxu0 %v419
    %1687 = vmatprep.subr.mxu0 %v424
    %1688 = vmatpush1.msra.mxu0 %v423
    %1689 = vmatprep.subr.mxu0 %v428
    %1690 = vmatpush1.msra.mxu0 %v427
    %1691 = vmatprep.subr.mxu0 %v432
    %1692 = vmatpush1.msra.mxu0 %v431
    %1693 = vmatprep.subr.mxu0 %v436
    %1694 = vmatpush1.msra.mxu0 %v435
    %1695 = vmatprep.subr.mxu0 %v440
    %1696 = vmatpush1.msra.mxu0 %v439
    %1697 = vmatprep.subr.mxu0 %v444
    %1698 = vmatpush1.msra.mxu0 %v443
    %1699 = vmatprep.subr.mxu0 %v448
    %1700 = vmatpush1.msra.mxu0 %v447
    %1701 = vmatprep.subr.mxu0 0.0
    %1702 = vmatpush1.msra.mxu0 0.0
    %1703 = vmatprep.subr.mxu0 0.0
    %1704 = vmatpush1.msra.mxu0 0.0
    %1705 = vmatprep.subr.mxu0 0.0
    %1706 = vmatpush1.msra.mxu0 0.0
    %1707 = vmatprep.subr.mxu0 0.0
    %1708 = vmatpush1.msra.mxu0 0.0
    %1709 = vmatprep.subr.mxu0 0.0
    %1710 = vmatpush1.msra.mxu0 0.0
    %1711 = vmatprep.subr.mxu0 0.0
    %1712 = vmatpush1.msra.mxu0 0.0
    %1713 = vmatprep.subr.mxu0 0.0
    %1714 = vmatpush1.msra.mxu0 0.0
    %1715 = vmatprep.subr.mxu0 0.0
    %1716 = vmatpush1.msra.mxu0 0.0
    %1717 = vmatprep.subr.mxu0 0.0
    %1718 = vmatpush1.msra.mxu0 0.0
    %1719 = vmatprep.subr.mxu0 0.0
    %1720 = vmatpush1.msra.mxu0 0.0
    %1721 = vmatprep.subr.mxu0 0.0
    %1722 = vmatpush1.msra.mxu0 0.0
    %1723 = vmatprep.subr.mxu0 0.0
    %1724 = vmatpush1.msra.mxu0 0.0
    %1725 = vmatprep.subr.mxu0 0.0
    %1726 = vmatpush1.msra.mxu0 0.0
    %1727 = vmatprep.subr.mxu0 0.0
    %1728 = vmatpush1.msra.mxu0 0.0
    %1729 = vmatprep.subr.mxu0 0.0
    %1730 = vmatpush1.msra.mxu0 0.0
    %1731 = vmatprep.subr.mxu0 0.0
    %1732 = vmatpush1.msra.mxu0 0.0
    %1733 = vmatprep.mubr.f32.mxu0 0.0
    %1734 = vmatmul.mubr.f32.gmra.mrb[0].mxu0 %v1664
    %v1735 = vpop.f32.mrb[0].mxu0
    %v1736 = vadd.f32 0.0, %v1735
    %v1737 = vpop.f32.mrb[0].mxu0
    %v1738 = vadd.f32 0.0, %v1737
    %1739 = vdwg.mxu0
    %1740 = vmatprep.subr.mxu0 %v390
    %1741 = vmatpush1.msra.mxu0 %v389
    %1742 = vmatprep.subr.mxu0 %v394
    %1743 = vmatpush1.msra.mxu0 %v393
    %1744 = vmatprep.subr.mxu0 %v398
    %1745 = vmatpush1.msra.mxu0 %v397
    %1746 = vmatprep.subr.mxu0 %v402
    %1747 = vmatpush1.msra.mxu0 %v401
    %1748 = vmatprep.subr.mxu0 %v406
    %1749 = vmatpush1.msra.mxu0 %v405
    %1750 = vmatprep.subr.mxu0 %v410
    %1751 = vmatpush1.msra.mxu0 %v409
    %1752 = vmatprep.subr.mxu0 %v414
    %1753 = vmatpush1.msra.mxu0 %v413
    %1754 = vmatprep.subr.mxu0 %v418
    %1755 = vmatpush1.msra.mxu0 %v417
    %1756 = vmatprep.subr.mxu0 %v422
    %1757 = vmatpush1.msra.mxu0 %v421
    %1758 = vmatprep.subr.mxu0 %v426
    %1759 = vmatpush1.msra.mxu0 %v425
    %1760 = vmatprep.subr.mxu0 %v430
    %1761 = vmatpush1.msra.mxu0 %v429
    %1762 = vmatprep.subr.mxu0 %v434
    %1763 = vmatpush1.msra.mxu0 %v433
    %1764 = vmatprep.subr.mxu0 %v438
    %1765 = vmatpush1.msra.mxu0 %v437
    %1766 = vmatprep.subr.mxu0 %v442
    %1767 = vmatpush1.msra.mxu0 %v441
    %1768 = vmatprep.subr.mxu0 %v446
    %1769 = vmatpush1.msra.mxu0 %v445
    %1770 = vmatprep.subr.mxu0 %v450
    %1771 = vmatpush1.msra.mxu0 %v449
    %1772 = vmatprep.subr.mxu0 0.0
    %1773 = vmatpush1.msra.mxu0 0.0
    %1774 = vmatprep.subr.mxu0 0.0
    %1775 = vmatpush1.msra.mxu0 0.0
    %1776 = vmatprep.subr.mxu0 0.0
    %1777 = vmatpush1.msra.mxu0 0.0
    %1778 = vmatprep.subr.mxu0 0.0
    %1779 = vmatpush1.msra.mxu0 0.0
    %1780 = vmatprep.subr.mxu0 0.0
    %1781 = vmatpush1.msra.mxu0 0.0
    %1782 = vmatprep.subr.mxu0 0.0
    %1783 = vmatpush1.msra.mxu0 0.0
    %1784 = vmatprep.subr.mxu0 0.0
    %1785 = vmatpush1.msra.mxu0 0.0
    %1786 = vmatprep.subr.mxu0 0.0
    %1787 = vmatpush1.msra.mxu0 0.0
    %1788 = vmatprep.subr.mxu0 0.0
    %1789 = vmatpush1.msra.mxu0 0.0
    %1790 = vmatprep.subr.mxu0 0.0
    %1791 = vmatpush1.msra.mxu0 0.0
    %1792 = vmatprep.subr.mxu0 0.0
    %1793 = vmatpush1.msra.mxu0 0.0
    %1794 = vmatprep.subr.mxu0 0.0
    %1795 = vmatpush1.msra.mxu0 0.0
    %1796 = vmatprep.subr.mxu0 0.0
    %1797 = vmatpush1.msra.mxu0 0.0
    %1798 = vmatprep.subr.mxu0 0.0
    %1799 = vmatpush1.msra.mxu0 0.0
    %1800 = vmatprep.subr.mxu0 0.0
    %1801 = vmatpush1.msra.mxu0 0.0
    %1802 = vmatprep.subr.mxu0 0.0
    %1803 = vmatpush1.msra.mxu0 0.0
    %1804 = vmatprep.mubr.f32.mxu0 0.0
    %1805 = vmatmul.mubr.f32.gmra.mrb[0].mxu0 %v1664
    %v1806 = vpop.f32.mrb[0].mxu0
    %v1807 = vadd.f32 0.0, %v1806
    %v1808 = vpop.f32.mrb[0].mxu0
    %v1809 = vadd.f32 0.0, %v1808
    %1810 = vdwg.mxu0
    %v1811 = vadd.f32 %v1665, %v1736
    %v1812 = vadd.f32 %v1666, %v1738
    %v1813 = vadd.f32 %v1667, %v1807
    %v1814 = vadd.f32 %v1668, %v1809
    %v1815 = vxor.u32 %v1811, 2147483648
    %v1816 = vmul.f32 %v1815, 1.442695
    %v1817 = vpow.pop %v1816
    %v1818 = vadd.f32 %v1817, 1.0
    %v1819 = vrcp.pop %v1818
    %v1820 = vmul.f32 1.0, %v1819
    %v1821 = vxor.u32 %v1812, 2147483648
    %v1822 = vmul.f32 %v1821, 1.442695
    %v1823 = vpow.pop %v1822
    %v1824 = vadd.f32 %v1823, 1.0
    %v1825 = vrcp.pop %v1824
    %v1826 = vmul.f32 1.0, %v1825
    %v1827 = vtanh.pop %v1813
    %v1828 = vxor.u32 %v1814, 2147483648
    %v1829 = vmul.f32 %v1828, 1.442695
    %v1830 = vpow.pop %v1829
    %v1831 = vadd.f32 %v1830, 1.0
    %v1832 = vrcp.pop %v1831
    %v1833 = vmul.f32 1.0, %v1832
    %v1834 = vmul.f32 %v1826, %v1662
    %v1835 = vmul.f32 %v1820, %v1827
    %v1836 = vadd.f32 %v1834, %v1835
    %v1837 = vtanh.pop %v1836
    %v1838 = vmul.f32 %v1833, %v1837
    %v1839 = vld [vmem:[%s3] sm:$0xff]
    %v1840 = vld [vmem:[%s3 + $0x8] sm:$0xff]
    %v1841 = vld [vmem:[%s3 + $0x10] sm:$0xff]
    %v1842 = vld [vmem:[%s3 + $0x18] sm:$0xff]
    %v1843 = vld [vmem:[%s3 + $0x20] sm:$0xff]
    %v1844 = vld [vmem:[%s3 + $0x28] sm:$0xff]
    %v1845 = vld [vmem:[%s3 + $0x30] sm:$0xff]
    %v1846 = vld [vmem:[%s3 + $0x38] sm:$0xff]
    %v1847 = vld [vmem:[%s3 + $0x40] sm:$0xff]
    %v1848 = vld [vmem:[%s3 + $0x48] sm:$0xff]
    %v1849 = vld [vmem:[%s3 + $0x50] sm:$0xff]
    %v1850 = vld [vmem:[%s3 + $0x58] sm:$0xff]
    %v1851 = vld [vmem:[%s3 + $0x60] sm:$0xff]
    %v1852 = vld [vmem:[%s3 + $0x68] sm:$0xff]
    %v1853 = vld [vmem:[%s3 + $0x70] sm:$0xff]
    %v1854 = vld [vmem:[%s3 + $0x78] sm:$0xff]
    %v1855 = vld [vmem:[%s4] sm:$0x1]
    %v1857 = vlaneseq
    %v1858 = vshrl.u32 %v1857, 7
    %v1859 = vsub.s32 0, %v1858
    %v1860 = vrot.slane %v1855, %v1859
    %1862 = vmatprep.subr.mxu0 0.0
    %1863 = vmatpush1.msra.mxu0 %v1839
    %1864 = vmatprep.subr.mxu0 0.0
    %1865 = vmatpush1.msra.mxu0 %v1840
    %1866 = vmatprep.subr.mxu0 0.0
    %1867 = vmatpush1.msra.mxu0 %v1841
    %1868 = vmatprep.subr.mxu0 0.0
    %1869 = vmatpush1.msra.mxu0 %v1842
    %1870 = vmatprep.subr.mxu0 0.0
    %1871 = vmatpush1.msra.mxu0 %v1843
    %1872 = vmatprep.subr.mxu0 0.0
    %1873 = vmatpush1.msra.mxu0 %v1844
    %1874 = vmatprep.subr.mxu0 0.0
    %1875 = vmatpush1.msra.mxu0 %v1845
    %1876 = vmatprep.subr.mxu0 0.0
    %1877 = vmatpush1.msra.mxu0 %v1846
    %1878 = vmatprep.subr.mxu0 0.0
    %1879 = vmatpush1.msra.mxu0 %v1847
    %1880 = vmatprep.subr.mxu0 0.0
    %1881 = vmatpush1.msra.mxu0 %v1848
    %1882 = vmatprep.subr.mxu0 0.0
    %1883 = vmatpush1.msra.mxu0 %v1849
    %1884 = vmatprep.subr.mxu0 0.0
    %1885 = vmatpush1.msra.mxu0 %v1850
    %1886 = vmatprep.subr.mxu0 0.0
    %1887 = vmatpush1.msra.mxu0 %v1851
    %1888 = vmatprep.subr.mxu0 0.0
    %1889 = vmatpush1.msra.mxu0 %v1852
    %1890 = vmatprep.subr.mxu0 0.0
    %1891 = vmatpush1.msra.mxu0 %v1853
    %1892 = vmatprep.subr.mxu0 0.0
    %1893 = vmatpush1.msra.mxu0 %v1854
    %1894 = vmatprep.subr.mxu0 0.0
    %1895 = vmatpush1.msra.mxu0 0.0
    %1896 = vmatprep.subr.mxu0 0.0
    %1897 = vmatpush1.msra.mxu0 0.0
    %1898 = vmatprep.subr.mxu0 0.0
    %1899 = vmatpush1.msra.mxu0 0.0
    %1900 = vmatprep.subr.mxu0 0.0
    %1901 = vmatpush1.msra.mxu0 0.0
    %1902 = vmatprep.subr.mxu0 0.0
    %1903 = vmatpush1.msra.mxu0 0.0
    %1904 = vmatprep.subr.mxu0 0.0
    %1905 = vmatpush1.msra.mxu0 0.0
    %1906 = vmatprep.subr.mxu0 0.0
    %1907 = vmatpush1.msra.mxu0 0.0
    %1908 = vmatprep.subr.mxu0 0.0
    %1909 = vmatpush1.msra.mxu0 0.0
    %1910 = vmatprep.subr.mxu0 0.0
    %1911 = vmatpush1.msra.mxu0 0.0
    %1912 = vmatprep.subr.mxu0 0.0
    %1913 = vmatpush1.msra.mxu0 0.0
    %1914 = vmatprep.subr.mxu0 0.0
    %1915 = vmatpush1.msra.mxu0 0.0
    %1916 = vmatprep.subr.mxu0 0.0
    %1917 = vmatpush1.msra.mxu0 0.0
    %1918 = vmatprep.subr.mxu0 0.0
    %1919 = vmatpush1.msra.mxu0 0.0
    %1920 = vmatprep.subr.mxu0 0.0
    %1921 = vmatpush1.msra.mxu0 0.0
    %1922 = vmatprep.subr.mxu0 0.0
    %1923 = vmatpush1.msra.mxu0 0.0
    %1924 = vmatprep.subr.mxu0 0.0
    %1925 = vmatpush1.msra.mxu0 0.0
    %1926 = vmatprep.mubr.f32.mxu0 0.0
    %1927 = vmatmul.mubr.f32.gmra.mrb[0].mxu0 %v1838
    %v1928 = vpop.f32.mrb[0].mxu0
    %v1929 = vadd.f32 %v1860, %v1928
    %v1930 = vpop.f32.mrb[0].mxu0
    %1931 = vdwg.mxu0
    %vm1932 = vcmask 99328
    %1933 = vst.msk [vmem:[#allocation3] sm:$0x3] %vm1932, %v1929
    // Predicated region
    $region22: #{lstm_model_forward.1} parent=1 // pred_check
      _
    $region23: #{lstm_model_forward.1} parent=1 // pred_check_branch
      %1935 = sbr.rel (0) target = $region25
    $region24: #{lstm_model_forward.1} parent=1 // pred_region
      %s1937 = ssub.s32 32, 32
      %1938 = vsyncadd [#allocation4], %s1937
      %s1940 = sshll.u32 [#allocation3], 4
      %s1941 = int_to_ptr.vmem [resolvable:$true] %s1940
      %1943 = dma.vmem_to_hbm [thread:$0]  %s1941, 32, %s5, [#allocation4]
    $region25: #{lstm_model_forward.1} parent=1 // pred_fallthru
      _
    // Predicated region
    $region26: #{lstm_model_forward.1} parent=1 // pred_check
      _
    $region27: #{lstm_model_forward.1} parent=1 // pred_check_branch
      %1945 = sbr.rel (0) target = $region29
    $region28: #{lstm_model_forward.1} parent=1 // pred_region
      %1946 = dma.done [#allocation4], 32
    $region29: #{lstm_model_forward.1} parent=1 // pred_fallthru
      _
    %1947 = vsyncpa [#allocation4], 1

</llo_original>
